<compile_context>
chip_gen: v7x
topology: tpu7x:2x2x1
jax: 0.10.0
libtpu: 0.0.40
codegen_flags: <defaults>
</compile_context>

<pallas_src>
import functools

import jax
import jax.numpy as jnp
import numpy as np
from jax.experimental import pallas as pl
from jax.experimental.pallas import tpu as pltpu


# --------------------------------------------------------------------------
# small helpers
# --------------------------------------------------------------------------
def _round_up(x, m):
    return ((x + m - 1) // m) * m


def _block_diag(mats):
    """(na, r, c) stacked matrices -> (na*r, na*c) block-diagonal matrix."""
    na, r, c = mats.shape
    eye = jnp.eye(na, dtype=mats.dtype)
    return jnp.einsum("aij,ab->aibj", mats, eye).reshape(na * r, na * c)


def _pad_to(m, shape):
    """Zero-pad a 2-D matrix up to `shape` (top-left aligned)."""
    out = jnp.zeros(shape, m.dtype)
    return out.at[tuple(slice(0, d) for d in m.shape)].set(m)


def _choose_batch_tiling(bs, max_tile=1024):
    """Pick (bt, bs_pad): sublane-aligned tile, >=2 grid steps whenever the
    batch allows (v7x has 2 TensorCores sharing the 'parallel' axis), tile
    capped at max_tile for VMEM headroom on 64 MiB chips."""
    bs8 = _round_up(max(bs, 1), 8)
    if bs8 <= 8:
        return bs8, bs8
    if bs8 >= 2 * max_tile:
        bt = max_tile
    else:
        bt = max(8, _round_up((bs8 + 1) // 2, 8))   # exactly 2 steps
    bs_pad = _round_up(bs8, bt)
    return bt, bs_pad


# --------------------------------------------------------------------------
# kernel: one grid step == one batch tile, all agents handled in-kernel
# --------------------------------------------------------------------------
def _rnn_agent_kernel(inp_ref, hin_ref, noise_ref,
                      fc1w_ref, fc1b_ref,
                      wih_ref, bih_ref, whh_ref, bhh_ref,
                      hwn_ref, hb_ref,
                      T_ref, S_ref,
                      wq_ref, hout_ref):
    f32 = jnp.float32
    hp = hin_ref.shape[1]                  # padded hidden slab width (128-aligned)

    x = inp_ref[...]                       # (bt, DP)  zero-padded lanes
    h_in = hin_ref[...]                    # (bt, HP)  zero-padded lanes

    # fc1 + ReLU for all agents at once (block-diagonal, padded to DP x HP).
    x1 = jnp.maximum(
        jnp.dot(x, fc1w_ref[...], preferred_element_type=f32) + fc1b_ref[...],
        0.0)                                                        # (bt, HP)

    # GRUCell, PyTorch gate order (r, z, n): ONE fused matmul per side; each
    # gate occupies its own 128-aligned lane segment (pad lanes stay zero).
    gi = jnp.dot(x1, wih_ref[...], preferred_element_type=f32) + bih_ref[...]
    gh = jnp.dot(h_in, whh_ref[...], preferred_element_type=f32) + bhh_ref[...]
    r = jax.nn.sigmoid(gi[:, 0:hp] + gh[:, 0:hp])
    z = jax.nn.sigmoid(gi[:, hp:2 * hp] + gh[:, hp:2 * hp])
    n = jnp.tanh(gi[:, 2 * hp:3 * hp] + r * gh[:, 2 * hp:3 * hp])
    h_new = (1.0 - z) * n + z * h_in                                # (bt, HP)

    # Hyper network, all agents at once:
    #   W_full[b, a*AH + g*H + h] = noise[b] . hyper_w[:nd, g*H+h]
    #                               + hyper_b[g*H+h] + hyper_w[nd+a, g*H+h]
    # (the agent one-hot rows are folded into the bias row hb_ref).
    w_full = (jnp.dot(noise_ref[...], hwn_ref[...], preferred_element_type=f32)
              + hb_ref[...])                                        # (bt, na*A*H)
    # h replicated across the A action groups of each agent (constant 0/1 MXU
    # matmul -> lane preserving, no reshape/relayout).
    h_rep = jnp.dot(h_new, T_ref[...], preferred_element_type=f32)  # (bt, na*A*H)
    # Block-diagonal group-sum accumulates every agent into ONE 128-lane slab.
    wq_ref[...] = jnp.dot(w_full * h_rep, S_ref[...],
                          preferred_element_type=f32).astype(wq_ref.dtype)
    hout_ref[...] = h_new.astype(hout_ref.dtype)


# --------------------------------------------------------------------------
# wrapper
# --------------------------------------------------------------------------
def rnn_agent_forward(inputs, hidden_state, noise, params):
    f32 = jnp.float32
    na, D, H = params["fc1_w"].shape
    AH = params["hyper_w"].shape[1]            # A * H (per agent)
    A = AH // H
    nd = noise.shape[1]
    bs = inputs.shape[0] // na

    naH, naD, naA, naAH = na * H, na * D, na * A, na * AH
    HP = _round_up(naH, 128)                   # padded hidden slab
    DP = _round_up(naD, 128)                   # padded input slab
    NP = _round_up(nd, 8)                      # tiny noise slab (masked but ~0 bytes)
    WQP = _round_up(naA, 128)                  # lane-dense wq slab

    assert params["hyper_w"].shape[0] == nd + na, "hyper_w rows must be noise_dim + n_agents"
    # wq pad lanes are zero only because S has no hot column >= na*A.
    assert naA <= WQP and naH <= HP and naD <= DP and nd <= NP

    # ---- one-time parameter repacking (done at init time in production) -----
    fc1_bd = _pad_to(_block_diag(params["fc1_w"].astype(f32)), (DP, HP))
    fc1_b = _pad_to(params["fc1_b"][:, 0, :].astype(f32).reshape(1, naH), (1, HP))

    wih_f = jnp.zeros((HP, 3 * HP), f32)
    whh_f = jnp.zeros((HP, 3 * HP), f32)
    bih_f = jnp.zeros((1, 3 * HP), f32)
    bhh_f = jnp.zeros((1, 3 * HP), f32)
    for g in range(3):                         # PyTorch gate order: r, z, n
        sl = slice(g * H, (g + 1) * H)
        wih_f = wih_f.at[:naH, g * HP:g * HP + naH].set(
            _block_diag(params["gru_wih"][:, :, sl].astype(f32)))
        whh_f = whh_f.at[:naH, g * HP:g * HP + naH].set(
            _block_diag(params["gru_whh"][:, :, sl].astype(f32)))
        bih_f = bih_f.at[0, g * HP:g * HP + naH].set(
            params["gru_bih"][:, 0, sl].astype(f32).reshape(naH))
        bhh_f = bhh_f.at[0, g * HP:g * HP + naH].set(
            params["gru_bhh"][:, 0, sl].astype(f32).reshape(naH))

    hw_noise = params["hyper_w"][:nd].astype(f32)          # (nd, AH)  noise rows
    hw_agent = params["hyper_w"][nd:].astype(f32)          # (na, AH)  one-hot rows
    hb = params["hyper_b"].astype(f32)                     # (1, AH)
    hw_tiled = jnp.zeros((NP, naAH), f32).at[:nd].set(jnp.tile(hw_noise, (1, na)))
    hb_full = (hb + hw_agent).reshape(1, naAH)             # agent rows folded into bias

    # Constant 0/1 matrices (lane-preserving replicate / group-sum on the MXU).
    # Constant index_map -> DMA'd once, VMEM-resident across the whole grid.
    T_np = np.zeros((HP, naAH), np.float32)
    for a in range(na):
        for g in range(A):
            T_np[a * H:(a + 1) * H, a * AH + g * H:a * AH + (g + 1) * H] = \
                np.eye(H, dtype=np.float32)
    S_np = np.zeros((naAH, WQP), np.float32)
    k = np.arange(naAH)
    S_np[k, (k // AH) * A + (k % AH) // H] = 1.0

    # ---- activations: free reshapes + zero pad to lane-dense slabs ----------
    bt, bs_pad = _choose_batch_tiling(bs)
    inp2 = jnp.zeros((bs_pad, DP), f32).at[:bs, :naD].set(
        inputs.astype(f32).reshape(bs, naD))
    hin2 = jnp.zeros((bs_pad, HP), f32).at[:bs, :naH].set(
        hidden_state.astype(f32).reshape(bs, naH))
    noise2 = jnp.zeros((bs_pad, NP), f32).at[:bs, :nd].set(noise.astype(f32))

    grid = (bs_pad // bt,)
    tile2 = lambda b: (b, 0)
    full2 = lambda b: (0, 0)

    grid_spec = pltpu.PrefetchScalarGridSpec(
        num_scalar_prefetch=0,
        grid=grid,
        in_specs=[
            pl.BlockSpec((bt, DP), tile2),          # inputs (lane dense)
            pl.BlockSpec((bt, HP), tile2),          # hidden state (lane dense)
            pl.BlockSpec((bt, NP), tile2),          # noise
            pl.BlockSpec((DP, HP), full2),          # fc1 W (block-diag, padded)
            pl.BlockSpec((1, HP), full2),           # fc1 b
            pl.BlockSpec((HP, 3 * HP), full2),      # GRU W_ih (3 gates fused)
            pl.BlockSpec((1, 3 * HP), full2),       # GRU b_ih
            pl.BlockSpec((HP, 3 * HP), full2),      # GRU W_hh (3 gates fused)
            pl.BlockSpec((1, 3 * HP), full2),       # GRU b_hh
            pl.BlockSpec((NP, naAH), full2),        # hyper W (noise rows, agent-tiled)
            pl.BlockSpec((1, naAH), full2),         # hyper b (+ agent one-hot rows)
            pl.BlockSpec((HP, naAH), full2),        # T: h replicate
            pl.BlockSpec((naAH, WQP), full2),       # S: block-diag group-sum
        ],
        out_specs=[
            pl.BlockSpec((bt, WQP), tile2),         # wq (single 128-lane slab)
            pl.BlockSpec((bt, HP), tile2),          # h (lane dense, padded)
        ],
    )

    wq_all, h_all = pl.pallas_call(
        _rnn_agent_kernel,
        out_shape=(
            jax.ShapeDtypeStruct((bs_pad, WQP), f32),
            jax.ShapeDtypeStruct((bs_pad, HP), f32),
        ),
        grid_spec=grid_spec,
        compiler_params=pltpu.CompilerParams(
            dimension_semantics=("parallel",),
            vmem_limit_bytes=48 * 1024 * 1024),
    )(inp2, hin2, noise2,
      fc1_bd, fc1_b, wih_f, bih_f, whh_f, bhh_f,
      hw_tiled, hb_full, jnp.asarray(T_np), jnp.asarray(S_np))

    # Back to the module's (bs*n_agents, ...) row ordering — free reshapes/slices.
    wq = wq_all[:bs, :naA].reshape(bs * na, A, 1)
    h = h_all[:bs, :naH].reshape(bs * na, H)
    return wq, h


# --------------------------------------------------------------------------
# pure-JAX reference mirroring the PyTorch forward (hyper=True path)
# --------------------------------------------------------------------------
def reference_forward(inputs, hidden_state, noise, params):
    P = jax.lax.Precision.HIGHEST
    na = params["fc1_w"].shape[0]
    H = params["fc1_w"].shape[2]
    A = params["hyper_w"].shape[1] // H
    bs = inputs.shape[0] // na
    inp = inputs.reshape(bs, na, -1)
    hin = hidden_state.reshape(bs, na, H)
    hs = []
    for a in range(na):
        x = jax.nn.relu(jnp.dot(inp[:, a], params["fc1_w"][a], precision=P)
                        + params["fc1_b"][a, 0])
        gi = jnp.dot(x, params["gru_wih"][a], precision=P) + params["gru_bih"][a, 0]
        gh = jnp.dot(hin[:, a], params["gru_whh"][a], precision=P) + params["gru_bhh"][a, 0]
        r = jax.nn.sigmoid(gi[:, :H] + gh[:, :H])
        z = jax.nn.sigmoid(gi[:, H:2 * H] + gh[:, H:2 * H])
        n = jnp.tanh(gi[:, 2 * H:] + r * gh[:, 2 * H:])
        hs.append((1.0 - z) * n + z * hin[:, a])
    h = jnp.stack(hs, 1).reshape(bs * na, H)
    agent_ids = jnp.tile(jnp.eye(na, dtype=inputs.dtype), (bs, 1))
    noise_rep = jnp.repeat(noise, na, axis=0)
    noise_input = jnp.concatenate([noise_rep, agent_ids], -1)
    W = (jnp.dot(noise_input, params["hyper_w"], precision=P)
         + params["hyper_b"][0]).reshape(-1, A, H)
    wq = jnp.einsum("bah,bh->ba", W, h, precision=P)[..., None]
    return wq, h


if __name__ == "__main__":
    # small, module-consistent shapes
    n_agents = 3
    input_shape = 24
    rnn_hidden_dim = 32
    n_actions = 8
    noise_dim = 4
    bs = 8

    key = jax.random.PRNGKey(0)
    ks = jax.random.split(key, 16)
    H, A, D, nd, na = rnn_hidden_dim, n_actions, input_shape, noise_dim, n_agents

    # deterministic synthetic parameters (stored already-transposed: (in, out))
    params = {
        "fc1_w": 0.1 * jax.random.normal(ks[0], (na, D, H), jnp.float32),
        "fc1_b": 0.1 * jax.random.normal(ks[1], (na, 1, H), jnp.float32),
        "gru_wih": 0.1 * jax.random.normal(ks[2], (na, H, 3 * H), jnp.float32),
        "gru_bih": 0.1 * jax.random.normal(ks[3], (na, 1, 3 * H), jnp.float32),
        "gru_whh": 0.1 * jax.random.normal(ks[4], (na, H, 3 * H), jnp.float32),
        "gru_bhh": 0.1 * jax.random.normal(ks[5], (na, 1, 3 * H), jnp.float32),
        "hyper_w": 0.1 * jax.random.normal(ks[6], (nd + na, A * H), jnp.float32),
        "hyper_b": 0.1 * jax.random.normal(ks[7], (1, A * H), jnp.float32),
    }

    inputs = jax.random.normal(ks[8], (bs * na, D), jnp.float32)
    hidden_state = jax.random.normal(ks[9], (bs * na, H), jnp.float32)
    noise = jax.random.normal(ks[10], (bs, nd), jnp.float32)

    fwd = jax.jit(functools.partial(rnn_agent_forward, params=params))
    wq, h = fwd(inputs, hidden_state, noise)
    jax.block_until_ready((wq, h))

    wq_ref, h_ref = reference_forward(inputs, hidden_state, noise, params)
    # 1e-3 absorbs MXU f32 pass-decomposition / transcendental-approx noise
    # while still catching any structural error (wrong gate/bias ~ O(0.1)).
    np.testing.assert_allclose(np.asarray(wq), np.asarray(wq_ref), rtol=1e-3, atol=1e-3)
    np.testing.assert_allclose(np.asarray(h), np.asarray(h_ref), rtol=1e-3, atol=1e-3)

    assert wq.shape == (bs * na, A, 1) and h.shape == (bs * na, H)
    print("KERNEL_OK")
</pallas_src>

<mosaic_0001>
module attributes {stable_mosaic.version = 11 : i64} {
  func.func @_rnn_agent_kernel(%arg0: i32, %arg1: memref<8x128xf32, #tpu.memory_space<vmem>>, %arg2: memref<8x128xf32, #tpu.memory_space<vmem>>, %arg3: memref<8x8xf32, #tpu.memory_space<vmem>>, %arg4: memref<128x128xf32, #tpu.memory_space<vmem>>, %arg5: memref<1x128xf32, #tpu.memory_space<vmem>>, %arg6: memref<128x384xf32, #tpu.memory_space<vmem>>, %arg7: memref<1x384xf32, #tpu.memory_space<vmem>>, %arg8: memref<128x384xf32, #tpu.memory_space<vmem>>, %arg9: memref<1x384xf32, #tpu.memory_space<vmem>>, %arg10: memref<8x768xf32, #tpu.memory_space<vmem>>, %arg11: memref<1x768xf32, #tpu.memory_space<vmem>>, %arg12: memref<128x768xf32, #tpu.memory_space<vmem>>, %arg13: memref<768x128xf32, #tpu.memory_space<vmem>>, %arg14: memref<8x128xf32, #tpu.memory_space<vmem>>, %arg15: memref<8x128xf32, #tpu.memory_space<vmem>>) attributes {dimension_semantics = [#tpu.dimension_semantics<parallel>], iteration_bounds = array<i64: 1>, scalar_prefetch = 0 : i64, scratch_operands = 0 : i64, tpu.core_type = #tpu.core_type<tc>, window_params = [{transform_indices = @transform_0, window_bounds = array<i64: 8, 128>}, {transform_indices = @transform_1, window_bounds = array<i64: 8, 128>}, {transform_indices = @transform_2, window_bounds = array<i64: 8, 8>}, {pipeline_mode = #tpu.pipeline_mode<synchronous>, transform_indices = @transform_3, window_bounds = array<i64: 128, 128>}, {pipeline_mode = #tpu.pipeline_mode<synchronous>, transform_indices = @transform_4, window_bounds = array<i64: 1, 128>}, {pipeline_mode = #tpu.pipeline_mode<synchronous>, transform_indices = @transform_5, window_bounds = array<i64: 128, 384>}, {pipeline_mode = #tpu.pipeline_mode<synchronous>, transform_indices = @transform_6, window_bounds = array<i64: 1, 384>}, {pipeline_mode = #tpu.pipeline_mode<synchronous>, transform_indices = @transform_7, window_bounds = array<i64: 128, 384>}, {pipeline_mode = #tpu.pipeline_mode<synchronous>, transform_indices = @transform_8, window_bounds = array<i64: 1, 384>}, {pipeline_mode = #tpu.pipeline_mode<synchronous>, transform_indices = @transform_9, window_bounds = array<i64: 8, 768>}, {pipeline_mode = #tpu.pipeline_mode<synchronous>, transform_indices = @transform_10, window_bounds = array<i64: 1, 768>}, {pipeline_mode = #tpu.pipeline_mode<synchronous>, transform_indices = @transform_11, window_bounds = array<i64: 128, 768>}, {pipeline_mode = #tpu.pipeline_mode<synchronous>, transform_indices = @transform_12, window_bounds = array<i64: 768, 128>}, {transform_indices = @transform_13, window_bounds = array<i64: 8, 128>}, {transform_indices = @transform_14, window_bounds = array<i64: 8, 128>}]} {
    %c0 = arith.constant 0 : index
    %c0_0 = arith.constant 0 : index
    %0 = vector.load %arg1[%c0, %c0_0] : memref<8x128xf32, #tpu.memory_space<vmem>>, vector<8x128xf32>
    %c0_1 = arith.constant 0 : index
    %c0_2 = arith.constant 0 : index
    %1 = vector.load %arg2[%c0_1, %c0_2] : memref<8x128xf32, #tpu.memory_space<vmem>>, vector<8x128xf32>
    %c0_3 = arith.constant 0 : index
    %c0_4 = arith.constant 0 : index
    %2 = vector.load %arg4[%c0_3, %c0_4] : memref<128x128xf32, #tpu.memory_space<vmem>>, vector<128x128xf32>
    %cst = arith.constant dense<0.000000e+00> : vector<8x128xf32>
    %3 = tpu.matmul %0, %2, %cst {dimension_numbers = #tpu.dot_dimension_numbers<[1], [0], [0], [1], [0, 0, 1, 1], [], []>} : vector<8x128xf32>, vector<128x128xf32>, vector<8x128xf32> -> vector<8x128xf32>
    %c0_5 = arith.constant 0 : index
    %c0_6 = arith.constant 0 : index
    %4 = vector.load %arg5[%c0_5, %c0_6] : memref<1x128xf32, #tpu.memory_space<vmem>>, vector<1x128xf32>
    %5 = vector.broadcast %4 : vector<1x128xf32> to vector<8x128xf32>
    %6 = arith.addf %3, %5 : vector<8x128xf32>
    %cst_7 = arith.constant 0.000000e+00 : f32
    %7 = vector.broadcast %cst_7 : f32 to vector<8x128xf32>
    %8 = arith.maximumf %6, %7 : vector<8x128xf32>
    %c0_8 = arith.constant 0 : index
    %c0_9 = arith.constant 0 : index
    %9 = vector.load %arg6[%c0_8, %c0_9] : memref<128x384xf32, #tpu.memory_space<vmem>>, vector<128x384xf32>
    %cst_10 = arith.constant dense<0.000000e+00> : vector<8x384xf32>
    %10 = tpu.matmul %8, %9, %cst_10 {dimension_numbers = #tpu.dot_dimension_numbers<[1], [0], [0], [1], [0, 0, 1, 1], [], []>} : vector<8x128xf32>, vector<128x384xf32>, vector<8x384xf32> -> vector<8x384xf32>
    %c0_11 = arith.constant 0 : index
    %c0_12 = arith.constant 0 : index
    %11 = vector.load %arg7[%c0_11, %c0_12] : memref<1x384xf32, #tpu.memory_space<vmem>>, vector<1x384xf32>
    %12 = vector.broadcast %11 : vector<1x384xf32> to vector<8x384xf32>
    %13 = arith.addf %10, %12 : vector<8x384xf32>
    %c0_13 = arith.constant 0 : index
    %c0_14 = arith.constant 0 : index
    %14 = vector.load %arg8[%c0_13, %c0_14] : memref<128x384xf32, #tpu.memory_space<vmem>>, vector<128x384xf32>
    %cst_15 = arith.constant dense<0.000000e+00> : vector<8x384xf32>
    %15 = tpu.matmul %1, %14, %cst_15 {dimension_numbers = #tpu.dot_dimension_numbers<[1], [0], [0], [1], [0, 0, 1, 1], [], []>} : vector<8x128xf32>, vector<128x384xf32>, vector<8x384xf32> -> vector<8x384xf32>
    %c0_16 = arith.constant 0 : index
    %c0_17 = arith.constant 0 : index
    %16 = vector.load %arg9[%c0_16, %c0_17] : memref<1x384xf32, #tpu.memory_space<vmem>>, vector<1x384xf32>
    %17 = vector.broadcast %16 : vector<1x384xf32> to vector<8x384xf32>
    %18 = arith.addf %15, %17 : vector<8x384xf32>
    %19 = vector.extract_strided_slice %13 {offsets = [0, 0], sizes = [8, 128], strides = [1, 1]} : vector<8x384xf32> to vector<8x128xf32>
    %20 = vector.extract_strided_slice %18 {offsets = [0, 0], sizes = [8, 128], strides = [1, 1]} : vector<8x384xf32> to vector<8x128xf32>
    %21 = arith.addf %19, %20 : vector<8x128xf32>
    %22 = arith.negf %21 : vector<8x128xf32>
    %23 = math.exp %22 : vector<8x128xf32>
    %cst_18 = arith.constant 1.000000e+00 : f32
    %24 = vector.broadcast %cst_18 : f32 to vector<8x128xf32>
    %25 = arith.addf %24, %23 : vector<8x128xf32>
    %26 = arith.divf %24, %25 : vector<8x128xf32>
    %27 = vector.extract_strided_slice %13 {offsets = [0, 128], sizes = [8, 128], strides = [1, 1]} : vector<8x384xf32> to vector<8x128xf32>
    %28 = vector.extract_strided_slice %18 {offsets = [0, 128], sizes = [8, 128], strides = [1, 1]} : vector<8x384xf32> to vector<8x128xf32>
    %29 = arith.addf %27, %28 : vector<8x128xf32>
    %30 = arith.negf %29 : vector<8x128xf32>
    %31 = math.exp %30 : vector<8x128xf32>
    %cst_19 = arith.constant 1.000000e+00 : f32
    %32 = vector.broadcast %cst_19 : f32 to vector<8x128xf32>
    %33 = arith.addf %32, %31 : vector<8x128xf32>
    %34 = arith.divf %32, %33 : vector<8x128xf32>
    %35 = vector.extract_strided_slice %13 {offsets = [0, 256], sizes = [8, 128], strides = [1, 1]} : vector<8x384xf32> to vector<8x128xf32>
    %36 = vector.extract_strided_slice %18 {offsets = [0, 256], sizes = [8, 128], strides = [1, 1]} : vector<8x384xf32> to vector<8x128xf32>
    %37 = arith.mulf %26, %36 : vector<8x128xf32>
    %38 = arith.addf %35, %37 : vector<8x128xf32>
    %39 = math.tanh %38 : vector<8x128xf32>
    %cst_20 = arith.constant 1.000000e+00 : f32
    %40 = vector.broadcast %cst_20 : f32 to vector<8x128xf32>
    %41 = arith.subf %40, %34 : vector<8x128xf32>
    %42 = arith.mulf %41, %39 : vector<8x128xf32>
    %43 = arith.mulf %34, %1 : vector<8x128xf32>
    %44 = arith.addf %42, %43 : vector<8x128xf32>
    %c0_21 = arith.constant 0 : index
    %c0_22 = arith.constant 0 : index
    %45 = vector.load %arg3[%c0_21, %c0_22] : memref<8x8xf32, #tpu.memory_space<vmem>>, vector<8x8xf32>
    %c0_23 = arith.constant 0 : index
    %c0_24 = arith.constant 0 : index
    %46 = vector.load %arg10[%c0_23, %c0_24] : memref<8x768xf32, #tpu.memory_space<vmem>>, vector<8x768xf32>
    %cst_25 = arith.constant dense<0.000000e+00> : vector<8x768xf32>
    %47 = tpu.matmul %45, %46, %cst_25 {dimension_numbers = #tpu.dot_dimension_numbers<[1], [0], [0], [1], [0, 0, 1, 1], [], []>} : vector<8x8xf32>, vector<8x768xf32>, vector<8x768xf32> -> vector<8x768xf32>
    %c0_26 = arith.constant 0 : index
    %c0_27 = arith.constant 0 : index
    %48 = vector.load %arg11[%c0_26, %c0_27] : memref<1x768xf32, #tpu.memory_space<vmem>>, vector<1x768xf32>
    %49 = vector.broadcast %48 : vector<1x768xf32> to vector<8x768xf32>
    %50 = arith.addf %47, %49 : vector<8x768xf32>
    %c0_28 = arith.constant 0 : index
    %c0_29 = arith.constant 0 : index
    %51 = vector.load %arg12[%c0_28, %c0_29] : memref<128x768xf32, #tpu.memory_space<vmem>>, vector<128x768xf32>
    %cst_30 = arith.constant dense<0.000000e+00> : vector<8x768xf32>
    %52 = tpu.matmul %44, %51, %cst_30 {dimension_numbers = #tpu.dot_dimension_numbers<[1], [0], [0], [1], [0, 0, 1, 1], [], []>} : vector<8x128xf32>, vector<128x768xf32>, vector<8x768xf32> -> vector<8x768xf32>
    %53 = arith.mulf %50, %52 : vector<8x768xf32>
    %c0_31 = arith.constant 0 : index
    %c0_32 = arith.constant 0 : index
    %54 = vector.load %arg13[%c0_31, %c0_32] : memref<768x128xf32, #tpu.memory_space<vmem>>, vector<768x128xf32>
    %cst_33 = arith.constant dense<0.000000e+00> : vector<8x128xf32>
    %55 = tpu.matmul %53, %54, %cst_33 {dimension_numbers = #tpu.dot_dimension_numbers<[1], [0], [0], [1], [0, 0, 1, 1], [], []>} : vector<8x768xf32>, vector<768x128xf32>, vector<8x128xf32> -> vector<8x128xf32>
    %c0_34 = arith.constant 0 : index
    %c0_35 = arith.constant 0 : index
    %56 = vector.load %arg14[%c0_34, %c0_35] : memref<8x128xf32, #tpu.memory_space<vmem>>, vector<8x128xf32>
    tpu.vector_store %arg14[%c0_34, %c0_35], %55 {strides = array<i32>} : memref<8x128xf32, #tpu.memory_space<vmem>>, vector<8x128xf32>,
    %c0_36 = arith.constant 0 : index
    %c0_37 = arith.constant 0 : index
    %57 = vector.load %arg15[%c0_36, %c0_37] : memref<8x128xf32, #tpu.memory_space<vmem>>, vector<8x128xf32>
    tpu.vector_store %arg15[%c0_36, %c0_37], %44 {strides = array<i32>} : memref<8x128xf32, #tpu.memory_space<vmem>>, vector<8x128xf32>,
    return
  }
  func.func @transform_0(%arg0: i32) -> (i32, i32) {
    %c0_i32 = arith.constant 0 : i32
    %c0_i32_0 = arith.constant 0 : i32
    return %arg0, %c0_i32 : i32, i32
  }
  func.func @transform_1(%arg0: i32) -> (i32, i32) {
    %c0_i32 = arith.constant 0 : i32
    %c0_i32_0 = arith.constant 0 : i32
    return %arg0, %c0_i32 : i32, i32
  }
  func.func @transform_2(%arg0: i32) -> (i32, i32) {
    %c0_i32 = arith.constant 0 : i32
    %c0_i32_0 = arith.constant 0 : i32
    return %arg0, %c0_i32 : i32, i32
  }
  func.func @transform_3(%arg0: i32) -> (i32, i32) {
    %c0_i32 = arith.constant 0 : i32
    %c0_i32_0 = arith.constant 0 : i32
    %c0_i32_1 = arith.constant 0 : i32
    return %c0_i32, %c0_i32_0 : i32, i32
  }
  func.func @transform_4(%arg0: i32) -> (i32, i32) {
    %c0_i32 = arith.constant 0 : i32
    %c0_i32_0 = arith.constant 0 : i32
    %c0_i32_1 = arith.constant 0 : i32
    return %c0_i32, %c0_i32_0 : i32, i32
  }
  func.func @transform_5(%arg0: i32) -> (i32, i32) {
    %c0_i32 = arith.constant 0 : i32
    %c0_i32_0 = arith.constant 0 : i32
    %c0_i32_1 = arith.constant 0 : i32
    return %c0_i32, %c0_i32_0 : i32, i32
  }
  func.func @transform_6(%arg0: i32) -> (i32, i32) {
    %c0_i32 = arith.constant 0 : i32
    %c0_i32_0 = arith.constant 0 : i32
    %c0_i32_1 = arith.constant 0 : i32
    return %c0_i32, %c0_i32_0 : i32, i32
  }
  func.func @transform_7(%arg0: i32) -> (i32, i32) {
    %c0_i32 = arith.constant 0 : i32
    %c0_i32_0 = arith.constant 0 : i32
    %c0_i32_1 = arith.constant 0 : i32
    return %c0_i32, %c0_i32_0 : i32, i32
  }
  func.func @transform_8(%arg0: i32) -> (i32, i32) {
    %c0_i32 = arith.constant 0 : i32
    %c0_i32_0 = arith.constant 0 : i32
    %c0_i32_1 = arith.constant 0 : i32
    return %c0_i32, %c0_i32_0 : i32, i32
  }
  func.func @transform_9(%arg0: i32) -> (i32, i32) {
    %c0_i32 = arith.constant 0 : i32
    %c0_i32_0 = arith.constant 0 : i32
    %c0_i32_1 = arith.constant 0 : i32
    return %c0_i32, %c0_i32_0 : i32, i32
  }
  func.func @transform_10(%arg0: i32) -> (i32, i32) {
    %c0_i32 = arith.constant 0 : i32
    %c0_i32_0 = arith.constant 0 : i32
    %c0_i32_1 = arith.constant 0 : i32
    return %c0_i32, %c0_i32_0 : i32, i32
  }
  func.func @transform_11(%arg0: i32) -> (i32, i32) {
    %c0_i32 = arith.constant 0 : i32
    %c0_i32_0 = arith.constant 0 : i32
    %c0_i32_1 = arith.constant 0 : i32
    return %c0_i32, %c0_i32_0 : i32, i32
  }
  func.func @transform_12(%arg0: i32) -> (i32, i32) {
    %c0_i32 = arith.constant 0 : i32
    %c0_i32_0 = arith.constant 0 : i32
    %c0_i32_1 = arith.constant 0 : i32
    return %c0_i32, %c0_i32_0 : i32, i32
  }
  func.func @transform_13(%arg0: i32) -> (i32, i32) {
    %c0_i32 = arith.constant 0 : i32
    %c0_i32_0 = arith.constant 0 : i32
    return %arg0, %c0_i32 : i32, i32
  }
  func.func @transform_14(%arg0: i32) -> (i32, i32) {
    %c0_i32 = arith.constant 0 : i32
    %c0_i32_0 = arith.constant 0 : i32
    return %arg0, %c0_i32 : i32, i32
  }
}

</mosaic_0001>

<llo_original>
// kernel: rnn_agent_forward.1
$region0: #{rnn_agent_forward.1}
  #allocation0 [shape = 'u32[]', space=smem, size = 0x4, offset = 0x4, fixed_abs, tag = 'smem constant byte address 0x4 - core index']
  #allocation1 [shape = 'u32[144,128]{1,0:T(1,128)}', space=vmem, size = 0x12000, scoped, tag = 'internal scratch']
  %s0 = inlined_call_operand.vmem [shape: f32[8,128], index: 0, kind: input, shape index: {}]
  %s1 = inlined_call_operand.vmem [shape: f32[8,128], index: 1, kind: input, shape index: {}]
  %s2 = inlined_call_operand.vmem [shape: f32[8,8], index: 2, kind: input, shape index: {}]
  %s3 = inlined_call_operand.vmem [shape: f32[128,128], index: 3, kind: input, shape index: {}]
  %s4 = inlined_call_operand.vmem [shape: f32[1,128], index: 4, kind: input, shape index: {}]
  %s5 = inlined_call_operand.vmem [shape: f32[128,384], index: 5, kind: input, shape index: {}]
  %s6 = inlined_call_operand.vmem [shape: f32[1,384], index: 6, kind: input, shape index: {}]
  %s7 = inlined_call_operand.vmem [shape: f32[128,384], index: 7, kind: input, shape index: {}]
  %s8 = inlined_call_operand.vmem [shape: f32[1,384], index: 8, kind: input, shape index: {}]
  %s9 = inlined_call_operand.vmem [shape: f32[8,768], index: 9, kind: input, shape index: {}]
  %s10 = inlined_call_operand.vmem [shape: f32[1,768], index: 10, kind: input, shape index: {}]
  %s11 = inlined_call_operand.vmem [shape: f32[128,768], index: 11, kind: input, shape index: {}]
  %s12 = inlined_call_operand.vmem [shape: f32[768,128], index: 12, kind: input, shape index: {}]
  %s13 = inlined_call_operand.vmem [shape: f32[8,128], index: 13, kind: output, shape index: {0}]
  %s14 = inlined_call_operand.vmem [shape: f32[8,128], index: 14, kind: output, shape index: {1}]
  %15 = xla_tuple %s13, %s14
  %s16 = sld [smem:[#allocation0]]
  $region70: #{rnn_agent_forward.1} parent=0
    _
  %s18 = ssub.s32 1, %s16
  %s19 = scalar_select 0, %s18, %s16
  // Predicated region
  $region2: #{rnn_agent_forward.1} parent=0 // pred_check
    _
  $region3: #{rnn_agent_forward.1} parent=0 // pred_check_branch
    %21 = sbr.rel (0) target = $region5
  $region4: #{rnn_agent_forward.1} parent=0 // pred_region
    _
  $region5: #{rnn_agent_forward.1} parent=0 // pred_fallthru
    _
  // Predicated region
  $region6: #{rnn_agent_forward.1} parent=0 // pred_check
    _
  $region7: #{rnn_agent_forward.1} parent=0 // pred_check_branch
    %23 = sbr.rel (0) target = $region9
  $region8: #{rnn_agent_forward.1} parent=0 // pred_region
    _
  $region9: #{rnn_agent_forward.1} parent=0 // pred_fallthru
    _
  // Predicated region
  $region10: #{rnn_agent_forward.1} parent=0 // pred_check
    _
  $region11: #{rnn_agent_forward.1} parent=0 // pred_check_branch
    %25 = sbr.rel (0) target = $region13
  $region12: #{rnn_agent_forward.1} parent=0 // pred_region
    _
  $region13: #{rnn_agent_forward.1} parent=0 // pred_fallthru
    _
  // Predicated region
  $region14: #{rnn_agent_forward.1} parent=0 // pred_check
    _
  $region15: #{rnn_agent_forward.1} parent=0 // pred_check_branch
    %27 = sbr.rel (0) target = $region17
  $region16: #{rnn_agent_forward.1} parent=0 // pred_region
    _
  $region17: #{rnn_agent_forward.1} parent=0 // pred_fallthru
    _
  // Predicated region
  $region18: #{rnn_agent_forward.1} parent=0 // pred_check
    _
  $region19: #{rnn_agent_forward.1} parent=0 // pred_check_branch
    %29 = sbr.rel (0) target = $region21
  $region20: #{rnn_agent_forward.1} parent=0 // pred_region
    _
  $region21: #{rnn_agent_forward.1} parent=0 // pred_fallthru
    _
  // Predicated region
  $region22: #{rnn_agent_forward.1} parent=0 // pred_check
    _
  $region23: #{rnn_agent_forward.1} parent=0 // pred_check_branch
    %31 = sbr.rel (0) target = $region25
  $region24: #{rnn_agent_forward.1} parent=0 // pred_region
    _
  $region25: #{rnn_agent_forward.1} parent=0 // pred_fallthru
    _
  // Predicated region
  $region26: #{rnn_agent_forward.1} parent=0 // pred_check
    _
  $region27: #{rnn_agent_forward.1} parent=0 // pred_check_branch
    %33 = sbr.rel (0) target = $region29
  $region28: #{rnn_agent_forward.1} parent=0 // pred_region
    _
  $region29: #{rnn_agent_forward.1} parent=0 // pred_fallthru
    _
  // Predicated region
  $region30: #{rnn_agent_forward.1} parent=0 // pred_check
    _
  $region31: #{rnn_agent_forward.1} parent=0 // pred_check_branch
    %35 = sbr.rel (0) target = $region33
  $region32: #{rnn_agent_forward.1} parent=0 // pred_region
    _
  $region33: #{rnn_agent_forward.1} parent=0 // pred_fallthru
    _
  // Predicated region
  $region34: #{rnn_agent_forward.1} parent=0 // pred_check
    _
  $region35: #{rnn_agent_forward.1} parent=0 // pred_check_branch
    %37 = sbr.rel (0) target = $region37
  $region36: #{rnn_agent_forward.1} parent=0 // pred_region
    _
  $region37: #{rnn_agent_forward.1} parent=0 // pred_fallthru
    _
  // Predicated region
  $region38: #{rnn_agent_forward.1} parent=0 // pred_check
    _
  $region39: #{rnn_agent_forward.1} parent=0 // pred_check_branch
    %39 = sbr.rel (0) target = $region41
  $region40: #{rnn_agent_forward.1} parent=0 // pred_region
    _
  $region41: #{rnn_agent_forward.1} parent=0 // pred_fallthru
    _
  // Predicated region
  $region42: #{rnn_agent_forward.1} parent=0 // pred_check
    _
  $region43: #{rnn_agent_forward.1} parent=0 // pred_check_branch
    %41 = sbr.rel (0) target = $region45
  $region44: #{rnn_agent_forward.1} parent=0 // pred_region
    _
  $region45: #{rnn_agent_forward.1} parent=0 // pred_fallthru
    _
  // Predicated region
  $region46: #{rnn_agent_forward.1} parent=0 // pred_check
    _
  $region47: #{rnn_agent_forward.1} parent=0 // pred_check_branch
    %43 = sbr.rel (0) target = $region49
  $region48: #{rnn_agent_forward.1} parent=0 // pred_region
    _
  $region49: #{rnn_agent_forward.1} parent=0 // pred_fallthru
    _
  // Predicated region
  $region50: #{rnn_agent_forward.1} parent=0 // pred_check
    _
  $region51: #{rnn_agent_forward.1} parent=0 // pred_check_branch
    %45 = sbr.rel (0) target = $region53
  $region52: #{rnn_agent_forward.1} parent=0 // pred_region
    _
  $region53: #{rnn_agent_forward.1} parent=0 // pred_fallthru
    _
  %v46 = vld [vmem:[%s0] sm:$0xff]
  %v47 = vld [vmem:[%s1] sm:$0xff]
  %v48 = vld [vmem:[%s3] sm:$0xff]
  %v49 = vld [vmem:[%s3 + $0x8] sm:$0xff]
  %v50 = vld [vmem:[%s3 + $0x10] sm:$0xff]
  %v51 = vld [vmem:[%s3 + $0x18] sm:$0xff]
  %v52 = vld [vmem:[%s3 + $0x20] sm:$0xff]
  %v53 = vld [vmem:[%s3 + $0x28] sm:$0xff]
  %v54 = vld [vmem:[%s3 + $0x30] sm:$0xff]
  %v55 = vld [vmem:[%s3 + $0x38] sm:$0xff]
  %v56 = vld [vmem:[%s3 + $0x40] sm:$0xff]
  %v57 = vld [vmem:[%s3 + $0x48] sm:$0xff]
  %v58 = vld [vmem:[%s3 + $0x50] sm:$0xff]
  %v59 = vld [vmem:[%s3 + $0x58] sm:$0xff]
  %v60 = vld [vmem:[%s3 + $0x60] sm:$0xff]
  %v61 = vld [vmem:[%s3 + $0x68] sm:$0xff]
  %v62 = vld [vmem:[%s3 + $0x70] sm:$0xff]
  %v63 = vld [vmem:[%s3 + $0x78] sm:$0xff]
  %v64 = vld [vmem:[%s4] sm:$0x1]
  %v66 = vlaneseq
  %v67 = vshrl.u32 %v66, 7
  %v68 = vsub.s32 0, %v67
  %v69 = vrot.slane %v64, %v68
  %71 = vmatprep.subr.mxu0 0.0
  %72 = vmatpush1.msra.mxu0 %v48
  %73 = vmatprep.subr.mxu0 0.0
  %74 = vmatpush1.msra.mxu0 %v49
  %75 = vmatprep.subr.mxu0 0.0
  %76 = vmatpush1.msra.mxu0 %v50
  %77 = vmatprep.subr.mxu0 0.0
  %78 = vmatpush1.msra.mxu0 %v51
  %79 = vmatprep.subr.mxu0 0.0
  %80 = vmatpush1.msra.mxu0 %v52
  %81 = vmatprep.subr.mxu0 0.0
  %82 = vmatpush1.msra.mxu0 %v53
  %83 = vmatprep.subr.mxu0 0.0
  %84 = vmatpush1.msra.mxu0 %v54
  %85 = vmatprep.subr.mxu0 0.0
  %86 = vmatpush1.msra.mxu0 %v55
  %87 = vmatprep.subr.mxu0 0.0
  %88 = vmatpush1.msra.mxu0 %v56
  %89 = vmatprep.subr.mxu0 0.0
  %90 = vmatpush1.msra.mxu0 %v57
  %91 = vmatprep.subr.mxu0 0.0
  %92 = vmatpush1.msra.mxu0 %v58
  %93 = vmatprep.subr.mxu0 0.0
  %94 = vmatpush1.msra.mxu0 %v59
  %95 = vmatprep.subr.mxu0 0.0
  %96 = vmatpush1.msra.mxu0 %v60
  %97 = vmatprep.subr.mxu0 0.0
  %98 = vmatpush1.msra.mxu0 %v61
  %99 = vmatprep.subr.mxu0 0.0
  %100 = vmatpush1.msra.mxu0 %v62
  %101 = vmatprep.subr.mxu0 0.0
  %102 = vmatpush1.msra.mxu0 %v63
  %103 = vmatprep.subr.mxu0 0.0
  %104 = vmatpush1.msra.mxu0 0.0
  %105 = vmatprep.subr.mxu0 0.0
  %106 = vmatpush1.msra.mxu0 0.0
  %107 = vmatprep.subr.mxu0 0.0
  %108 = vmatpush1.msra.mxu0 0.0
  %109 = vmatprep.subr.mxu0 0.0
  %110 = vmatpush1.msra.mxu0 0.0
  %111 = vmatprep.subr.mxu0 0.0
  %112 = vmatpush1.msra.mxu0 0.0
  %113 = vmatprep.subr.mxu0 0.0
  %114 = vmatpush1.msra.mxu0 0.0
  %115 = vmatprep.subr.mxu0 0.0
  %116 = vmatpush1.msra.mxu0 0.0
  %117 = vmatprep.subr.mxu0 0.0
  %118 = vmatpush1.msra.mxu0 0.0
  %119 = vmatprep.subr.mxu0 0.0
  %120 = vmatpush1.msra.mxu0 0.0
  %121 = vmatprep.subr.mxu0 0.0
  %122 = vmatpush1.msra.mxu0 0.0
  %123 = vmatprep.subr.mxu0 0.0
  %124 = vmatpush1.msra.mxu0 0.0
  %125 = vmatprep.subr.mxu0 0.0
  %126 = vmatpush1.msra.mxu0 0.0
  %127 = vmatprep.subr.mxu0 0.0
  %128 = vmatpush1.msra.mxu0 0.0
  %129 = vmatprep.subr.mxu0 0.0
  %130 = vmatpush1.msra.mxu0 0.0
  %131 = vmatprep.subr.mxu0 0.0
  %132 = vmatpush1.msra.mxu0 0.0
  %133 = vmatprep.subr.mxu0 0.0
  %134 = vmatpush1.msra.mxu0 0.0
  %135 = vmatprep.mubr.f32.mxu0 0.0
  %136 = vmatmul.mubr.f32.gmra.mrb[0].mxu0 %v46
  %v137 = vpop.f32.mrb[0].mxu0
  %v138 = vadd.f32 %v69, %v137
  %v139 = vpop.f32.mrb[0].mxu0
  %140 = vdwg.mxu0
  %v141 = vmax.f32 %v138, 0.0
  %v142 = vld [vmem:[%s5] sm:$0xff]
  %v143 = vld [vmem:[%s5 + $0x8] sm:$0xff]
  %v144 = vld [vmem:[%s5 + $0x10] sm:$0xff]
  %v145 = vld [vmem:[%s5 + $0x18] sm:$0xff]
  %v146 = vld [vmem:[%s5 + $0x20] sm:$0xff]
  %v147 = vld [vmem:[%s5 + $0x28] sm:$0xff]
  %v148 = vld [vmem:[%s5 + $0x30] sm:$0xff]
  %v149 = vld [vmem:[%s5 + $0x38] sm:$0xff]
  %v150 = vld [vmem:[%s5 + $0x40] sm:$0xff]
  %v151 = vld [vmem:[%s5 + $0x48] sm:$0xff]
  %v152 = vld [vmem:[%s5 + $0x50] sm:$0xff]
  %v153 = vld [vmem:[%s5 + $0x58] sm:$0xff]
  %v154 = vld [vmem:[%s5 + $0x60] sm:$0xff]
  %v155 = vld [vmem:[%s5 + $0x68] sm:$0xff]
  %v156 = vld [vmem:[%s5 + $0x70] sm:$0xff]
  %v157 = vld [vmem:[%s5 + $0x78] sm:$0xff]
  %v158 = vld [vmem:[%s5 + $0x80] sm:$0xff]
  %v159 = vld [vmem:[%s5 + $0x88] sm:$0xff]
  %v160 = vld [vmem:[%s5 + $0x90] sm:$0xff]
  %v161 = vld [vmem:[%s5 + $0x98] sm:$0xff]
  %v162 = vld [vmem:[%s5 + $0xa0] sm:$0xff]
  %v163 = vld [vmem:[%s5 + $0xa8] sm:$0xff]
  %v164 = vld [vmem:[%s5 + $0xb0] sm:$0xff]
  %v165 = vld [vmem:[%s5 + $0xb8] sm:$0xff]
  %v166 = vld [vmem:[%s5 + $0xc0] sm:$0xff]
  %v167 = vld [vmem:[%s5 + $0xc8] sm:$0xff]
  %v168 = vld [vmem:[%s5 + $0xd0] sm:$0xff]
  %v169 = vld [vmem:[%s5 + $0xd8] sm:$0xff]
  %v170 = vld [vmem:[%s5 + $0xe0] sm:$0xff]
  %v171 = vld [vmem:[%s5 + $0xe8] sm:$0xff]
  %v172 = vld [vmem:[%s5 + $0xf0] sm:$0xff]
  %v173 = vld [vmem:[%s5 + $0xf8] sm:$0xff]
  %v174 = vld [vmem:[%s5 + $0x100] sm:$0xff]
  %v175 = vld [vmem:[%s5 + $0x108] sm:$0xff]
  %v176 = vld [vmem:[%s5 + $0x110] sm:$0xff]
  %v177 = vld [vmem:[%s5 + $0x118] sm:$0xff]
  %v178 = vld [vmem:[%s5 + $0x120] sm:$0xff]
  %v179 = vld [vmem:[%s5 + $0x128] sm:$0xff]
  %v180 = vld [vmem:[%s5 + $0x130] sm:$0xff]
  %v181 = vld [vmem:[%s5 + $0x138] sm:$0xff]
  %v182 = vld [vmem:[%s5 + $0x140] sm:$0xff]
  %v183 = vld [vmem:[%s5 + $0x148] sm:$0xff]
  %v184 = vld [vmem:[%s5 + $0x150] sm:$0xff]
  %v185 = vld [vmem:[%s5 + $0x158] sm:$0xff]
  %v186 = vld [vmem:[%s5 + $0x160] sm:$0xff]
  %v187 = vld [vmem:[%s5 + $0x168] sm:$0xff]
  %v188 = vld [vmem:[%s5 + $0x170] sm:$0xff]
  %v189 = vld [vmem:[%s5 + $0x178] sm:$0xff]
  %v190 = vld [vmem:[%s6] sm:$0x7]
  %v192 = vlaneseq
  %v193 = vshrl.u32 %v192, 7
  %v194 = vsub.s32 0, %v193
  %v195 = vrot.slane %v190, %v194
  %v196 = vlaneseq
  %v197 = vshrl.u32 %v196, 7
  %v198 = vsub.s32 1, %v197
  %v199 = vrot.slane %v190, %v198
  %v200 = vlaneseq
  %v201 = vshrl.u32 %v200, 7
  %v202 = vsub.s32 2, %v201
  %v203 = vrot.slane %v190, %v202
  %207 = vmatprep.subr.mxu0 %v143
  %208 = vmatpush1.msra.mxu0 %v142
  %209 = vmatprep.subr.mxu0 %v146
  %210 = vmatpush1.msra.mxu0 %v145
  %211 = vmatprep.subr.mxu0 %v149
  %212 = vmatpush1.msra.mxu0 %v148
  %213 = vmatprep.subr.mxu0 %v152
  %214 = vmatpush1.msra.mxu0 %v151
  %215 = vmatprep.subr.mxu0 %v155
  %216 = vmatpush1.msra.mxu0 %v154
  %217 = vmatprep.subr.mxu0 %v158
  %218 = vmatpush1.msra.mxu0 %v157
  %219 = vmatprep.subr.mxu0 %v161
  %220 = vmatpush1.msra.mxu0 %v160
  %221 = vmatprep.subr.mxu0 %v164
  %222 = vmatpush1.msra.mxu0 %v163
  %223 = vmatprep.subr.mxu0 %v167
  %224 = vmatpush1.msra.mxu0 %v166
  %225 = vmatprep.subr.mxu0 %v170
  %226 = vmatpush1.msra.mxu0 %v169
  %227 = vmatprep.subr.mxu0 %v173
  %228 = vmatpush1.msra.mxu0 %v172
  %229 = vmatprep.subr.mxu0 %v176
  %230 = vmatpush1.msra.mxu0 %v175
  %231 = vmatprep.subr.mxu0 %v179
  %232 = vmatpush1.msra.mxu0 %v178
  %233 = vmatprep.subr.mxu0 %v182
  %234 = vmatpush1.msra.mxu0 %v181
  %235 = vmatprep.subr.mxu0 %v185
  %236 = vmatpush1.msra.mxu0 %v184
  %237 = vmatprep.subr.mxu0 %v188
  %238 = vmatpush1.msra.mxu0 %v187
  %239 = vmatprep.subr.mxu0 0.0
  %240 = vmatpush1.msra.mxu0 0.0
  %241 = vmatprep.subr.mxu0 0.0
  %242 = vmatpush1.msra.mxu0 0.0
  %243 = vmatprep.subr.mxu0 0.0
  %244 = vmatpush1.msra.mxu0 0.0
  %245 = vmatprep.subr.mxu0 0.0
  %246 = vmatpush1.msra.mxu0 0.0
  %247 = vmatprep.subr.mxu0 0.0
  %248 = vmatpush1.msra.mxu0 0.0
  %249 = vmatprep.subr.mxu0 0.0
  %250 = vmatpush1.msra.mxu0 0.0
  %251 = vmatprep.subr.mxu0 0.0
  %252 = vmatpush1.msra.mxu0 0.0
  %253 = vmatprep.subr.mxu0 0.0
  %254 = vmatpush1.msra.mxu0 0.0
  %255 = vmatprep.subr.mxu0 0.0
  %256 = vmatpush1.msra.mxu0 0.0
  %257 = vmatprep.subr.mxu0 0.0
  %258 = vmatpush1.msra.mxu0 0.0
  %259 = vmatprep.subr.mxu0 0.0
  %260 = vmatpush1.msra.mxu0 0.0
  %261 = vmatprep.subr.mxu0 0.0
  %262 = vmatpush1.msra.mxu0 0.0
  %263 = vmatprep.subr.mxu0 0.0
  %264 = vmatpush1.msra.mxu0 0.0
  %265 = vmatprep.subr.mxu0 0.0
  %266 = vmatpush1.msra.mxu0 0.0
  %267 = vmatprep.subr.mxu0 0.0
  %268 = vmatpush1.msra.mxu0 0.0
  %269 = vmatprep.subr.mxu0 0.0
  %270 = vmatpush1.msra.mxu0 0.0
  %271 = vmatprep.mubr.f32.mxu0 0.0
  %272 = vmatmul.mubr.f32.gmra.mrb[0].mxu0 %v141
  %v273 = vpop.f32.mrb[0].mxu0
  %v274 = vadd.f32 %v195, %v273
  %v275 = vpop.f32.mrb[0].mxu0
  %v276 = vadd.f32 %v199, %v275
  %277 = vdwg.mxu0
  %278 = vmatprep.subr.mxu0 0.0
  %279 = vmatpush1.msra.mxu0 %v144
  %280 = vmatprep.subr.mxu0 0.0
  %281 = vmatpush1.msra.mxu0 %v147
  %282 = vmatprep.subr.mxu0 0.0
  %283 = vmatpush1.msra.mxu0 %v150
  %284 = vmatprep.subr.mxu0 0.0
  %285 = vmatpush1.msra.mxu0 %v153
  %286 = vmatprep.subr.mxu0 0.0
  %287 = vmatpush1.msra.mxu0 %v156
  %288 = vmatprep.subr.mxu0 0.0
  %289 = vmatpush1.msra.mxu0 %v159
  %290 = vmatprep.subr.mxu0 0.0
  %291 = vmatpush1.msra.mxu0 %v162
  %292 = vmatprep.subr.mxu0 0.0
  %293 = vmatpush1.msra.mxu0 %v165
  %294 = vmatprep.subr.mxu0 0.0
  %295 = vmatpush1.msra.mxu0 %v168
  %296 = vmatprep.subr.mxu0 0.0
  %297 = vmatpush1.msra.mxu0 %v171
  %298 = vmatprep.subr.mxu0 0.0
  %299 = vmatpush1.msra.mxu0 %v174
  %300 = vmatprep.subr.mxu0 0.0
  %301 = vmatpush1.msra.mxu0 %v177
  %302 = vmatprep.subr.mxu0 0.0
  %303 = vmatpush1.msra.mxu0 %v180
  %304 = vmatprep.subr.mxu0 0.0
  %305 = vmatpush1.msra.mxu0 %v183
  %306 = vmatprep.subr.mxu0 0.0
  %307 = vmatpush1.msra.mxu0 %v186
  %308 = vmatprep.subr.mxu0 0.0
  %309 = vmatpush1.msra.mxu0 %v189
  %310 = vmatprep.subr.mxu0 0.0
  %311 = vmatpush1.msra.mxu0 0.0
  %312 = vmatprep.subr.mxu0 0.0
  %313 = vmatpush1.msra.mxu0 0.0
  %314 = vmatprep.subr.mxu0 0.0
  %315 = vmatpush1.msra.mxu0 0.0
  %316 = vmatprep.subr.mxu0 0.0
  %317 = vmatpush1.msra.mxu0 0.0
  %318 = vmatprep.subr.mxu0 0.0
  %319 = vmatpush1.msra.mxu0 0.0
  %320 = vmatprep.subr.mxu0 0.0
  %321 = vmatpush1.msra.mxu0 0.0
  %322 = vmatprep.subr.mxu0 0.0
  %323 = vmatpush1.msra.mxu0 0.0
  %324 = vmatprep.subr.mxu0 0.0
  %325 = vmatpush1.msra.mxu0 0.0
  %326 = vmatprep.subr.mxu0 0.0
  %327 = vmatpush1.msra.mxu0 0.0
  %328 = vmatprep.subr.mxu0 0.0
  %329 = vmatpush1.msra.mxu0 0.0
  %330 = vmatprep.subr.mxu0 0.0
  %331 = vmatpush1.msra.mxu0 0.0
  %332 = vmatprep.subr.mxu0 0.0
  %333 = vmatpush1.msra.mxu0 0.0
  %334 = vmatprep.subr.mxu0 0.0
  %335 = vmatpush1.msra.mxu0 0.0
  %336 = vmatprep.subr.mxu0 0.0
  %337 = vmatpush1.msra.mxu0 0.0
  %338 = vmatprep.subr.mxu0 0.0
  %339 = vmatpush1.msra.mxu0 0.0
  %340 = vmatprep.subr.mxu0 0.0
  %341 = vmatpush1.msra.mxu0 0.0
  %342 = vmatprep.mubr.f32.mxu0 0.0
  %343 = vmatmul.mubr.f32.gmra.mrb[0].mxu0 %v141
  %v344 = vpop.f32.mrb[0].mxu0
  %v345 = vadd.f32 %v203, %v344
  %v346 = vpop.f32.mrb[0].mxu0
  %347 = vdwg.mxu0
  %v348 = vld [vmem:[%s7] sm:$0xff]
  %v349 = vld [vmem:[%s7 + $0x8] sm:$0xff]
  %v350 = vld [vmem:[%s7 + $0x10] sm:$0xff]
  %v351 = vld [vmem:[%s7 + $0x18] sm:$0xff]
  %v352 = vld [vmem:[%s7 + $0x20] sm:$0xff]
  %v353 = vld [vmem:[%s7 + $0x28] sm:$0xff]
  %v354 = vld [vmem:[%s7 + $0x30] sm:$0xff]
  %v355 = vld [vmem:[%s7 + $0x38] sm:$0xff]
  %v356 = vld [vmem:[%s7 + $0x40] sm:$0xff]
  %v357 = vld [vmem:[%s7 + $0x48] sm:$0xff]
  %v358 = vld [vmem:[%s7 + $0x50] sm:$0xff]
  %v359 = vld [vmem:[%s7 + $0x58] sm:$0xff]
  %v360 = vld [vmem:[%s7 + $0x60] sm:$0xff]
  %v361 = vld [vmem:[%s7 + $0x68] sm:$0xff]
  %v362 = vld [vmem:[%s7 + $0x70] sm:$0xff]
  %v363 = vld [vmem:[%s7 + $0x78] sm:$0xff]
  %v364 = vld [vmem:[%s7 + $0x80] sm:$0xff]
  %v365 = vld [vmem:[%s7 + $0x88] sm:$0xff]
  %v366 = vld [vmem:[%s7 + $0x90] sm:$0xff]
  %v367 = vld [vmem:[%s7 + $0x98] sm:$0xff]
  %v368 = vld [vmem:[%s7 + $0xa0] sm:$0xff]
  %v369 = vld [vmem:[%s7 + $0xa8] sm:$0xff]
  %v370 = vld [vmem:[%s7 + $0xb0] sm:$0xff]
  %v371 = vld [vmem:[%s7 + $0xb8] sm:$0xff]
  %v372 = vld [vmem:[%s7 + $0xc0] sm:$0xff]
  %v373 = vld [vmem:[%s7 + $0xc8] sm:$0xff]
  %v374 = vld [vmem:[%s7 + $0xd0] sm:$0xff]
  %v375 = vld [vmem:[%s7 + $0xd8] sm:$0xff]
  %v376 = vld [vmem:[%s7 + $0xe0] sm:$0xff]
  %v377 = vld [vmem:[%s7 + $0xe8] sm:$0xff]
  %v378 = vld [vmem:[%s7 + $0xf0] sm:$0xff]
  %v379 = vld [vmem:[%s7 + $0xf8] sm:$0xff]
  %v380 = vld [vmem:[%s7 + $0x100] sm:$0xff]
  %v381 = vld [vmem:[%s7 + $0x108] sm:$0xff]
  %v382 = vld [vmem:[%s7 + $0x110] sm:$0xff]
  %v383 = vld [vmem:[%s7 + $0x118] sm:$0xff]
  %v384 = vld [vmem:[%s7 + $0x120] sm:$0xff]
  %v385 = vld [vmem:[%s7 + $0x128] sm:$0xff]
  %v386 = vld [vmem:[%s7 + $0x130] sm:$0xff]
  %v387 = vld [vmem:[%s7 + $0x138] sm:$0xff]
  %v388 = vld [vmem:[%s7 + $0x140] sm:$0xff]
  %v389 = vld [vmem:[%s7 + $0x148] sm:$0xff]
  %v390 = vld [vmem:[%s7 + $0x150] sm:$0xff]
  %v391 = vld [vmem:[%s7 + $0x158] sm:$0xff]
  %v392 = vld [vmem:[%s7 + $0x160] sm:$0xff]
  %v393 = vld [vmem:[%s7 + $0x168] sm:$0xff]
  %v394 = vld [vmem:[%s7 + $0x170] sm:$0xff]
  %v395 = vld [vmem:[%s7 + $0x178] sm:$0xff]
  %v396 = vld [vmem:[%s8] sm:$0x7]
  %v398 = vlaneseq
  %v399 = vshrl.u32 %v398, 7
  %v400 = vsub.s32 0, %v399
  %v401 = vrot.slane %v396, %v400
  %v402 = vlaneseq
  %v403 = vshrl.u32 %v402, 7
  %v404 = vsub.s32 1, %v403
  %v405 = vrot.slane %v396, %v404
  %v406 = vlaneseq
  %v407 = vshrl.u32 %v406, 7
  %v408 = vsub.s32 2, %v407
  %v409 = vrot.slane %v396, %v408
  %413 = vmatprep.subr.mxu0 %v349
  %414 = vmatpush1.msra.mxu0 %v348
  %415 = vmatprep.subr.mxu0 %v352
  %416 = vmatpush1.msra.mxu0 %v351
  %417 = vmatprep.subr.mxu0 %v355
  %418 = vmatpush1.msra.mxu0 %v354
  %419 = vmatprep.subr.mxu0 %v358
  %420 = vmatpush1.msra.mxu0 %v357
  %421 = vmatprep.subr.mxu0 %v361
  %422 = vmatpush1.msra.mxu0 %v360
  %423 = vmatprep.subr.mxu0 %v364
  %424 = vmatpush1.msra.mxu0 %v363
  %425 = vmatprep.subr.mxu0 %v367
  %426 = vmatpush1.msra.mxu0 %v366
  %427 = vmatprep.subr.mxu0 %v370
  %428 = vmatpush1.msra.mxu0 %v369
  %429 = vmatprep.subr.mxu0 %v373
  %430 = vmatpush1.msra.mxu0 %v372
  %431 = vmatprep.subr.mxu0 %v376
  %432 = vmatpush1.msra.mxu0 %v375
  %433 = vmatprep.subr.mxu0 %v379
  %434 = vmatpush1.msra.mxu0 %v378
  %435 = vmatprep.subr.mxu0 %v382
  %436 = vmatpush1.msra.mxu0 %v381
  %437 = vmatprep.subr.mxu0 %v385
  %438 = vmatpush1.msra.mxu0 %v384
  %439 = vmatprep.subr.mxu0 %v388
  %440 = vmatpush1.msra.mxu0 %v387
  %441 = vmatprep.subr.mxu0 %v391
  %442 = vmatpush1.msra.mxu0 %v390
  %443 = vmatprep.subr.mxu0 %v394
  %444 = vmatpush1.msra.mxu0 %v393
  %445 = vmatprep.subr.mxu0 0.0
  %446 = vmatpush1.msra.mxu0 0.0
  %447 = vmatprep.subr.mxu0 0.0
  %448 = vmatpush1.msra.mxu0 0.0
  %449 = vmatprep.subr.mxu0 0.0
  %450 = vmatpush1.msra.mxu0 0.0
  %451 = vmatprep.subr.mxu0 0.0
  %452 = vmatpush1.msra.mxu0 0.0
  %453 = vmatprep.subr.mxu0 0.0
  %454 = vmatpush1.msra.mxu0 0.0
  %455 = vmatprep.subr.mxu0 0.0
  %456 = vmatpush1.msra.mxu0 0.0
  %457 = vmatprep.subr.mxu0 0.0
  %458 = vmatpush1.msra.mxu0 0.0
  %459 = vmatprep.subr.mxu0 0.0
  %460 = vmatpush1.msra.mxu0 0.0
  %461 = vmatprep.subr.mxu0 0.0
  %462 = vmatpush1.msra.mxu0 0.0
  %463 = vmatprep.subr.mxu0 0.0
  %464 = vmatpush1.msra.mxu0 0.0
  %465 = vmatprep.subr.mxu0 0.0
  %466 = vmatpush1.msra.mxu0 0.0
  %467 = vmatprep.subr.mxu0 0.0
  %468 = vmatpush1.msra.mxu0 0.0
  %469 = vmatprep.subr.mxu0 0.0
  %470 = vmatpush1.msra.mxu0 0.0
  %471 = vmatprep.subr.mxu0 0.0
  %472 = vmatpush1.msra.mxu0 0.0
  %473 = vmatprep.subr.mxu0 0.0
  %474 = vmatpush1.msra.mxu0 0.0
  %475 = vmatprep.subr.mxu0 0.0
  %476 = vmatpush1.msra.mxu0 0.0
  %477 = vmatprep.mubr.f32.mxu0 0.0
  %478 = vmatmul.mubr.f32.gmra.mrb[0].mxu0 %v47
  %v479 = vpop.f32.mrb[0].mxu0
  %v480 = vadd.f32 %v401, %v479
  %v481 = vpop.f32.mrb[0].mxu0
  %v482 = vadd.f32 %v405, %v481
  %483 = vdwg.mxu0
  %484 = vmatprep.subr.mxu0 0.0
  %485 = vmatpush1.msra.mxu0 %v350
  %486 = vmatprep.subr.mxu0 0.0
  %487 = vmatpush1.msra.mxu0 %v353
  %488 = vmatprep.subr.mxu0 0.0
  %489 = vmatpush1.msra.mxu0 %v356
  %490 = vmatprep.subr.mxu0 0.0
  %491 = vmatpush1.msra.mxu0 %v359
  %492 = vmatprep.subr.mxu0 0.0
  %493 = vmatpush1.msra.mxu0 %v362
  %494 = vmatprep.subr.mxu0 0.0
  %495 = vmatpush1.msra.mxu0 %v365
  %496 = vmatprep.subr.mxu0 0.0
  %497 = vmatpush1.msra.mxu0 %v368
  %498 = vmatprep.subr.mxu0 0.0
  %499 = vmatpush1.msra.mxu0 %v371
  %500 = vmatprep.subr.mxu0 0.0
  %501 = vmatpush1.msra.mxu0 %v374
  %502 = vmatprep.subr.mxu0 0.0
  %503 = vmatpush1.msra.mxu0 %v377
  %504 = vmatprep.subr.mxu0 0.0
  %505 = vmatpush1.msra.mxu0 %v380
  %506 = vmatprep.subr.mxu0 0.0
  %507 = vmatpush1.msra.mxu0 %v383
  %508 = vmatprep.subr.mxu0 0.0
  %509 = vmatpush1.msra.mxu0 %v386
  %510 = vmatprep.subr.mxu0 0.0
  %511 = vmatpush1.msra.mxu0 %v389
  %512 = vmatprep.subr.mxu0 0.0
  %513 = vmatpush1.msra.mxu0 %v392
  %514 = vmatprep.subr.mxu0 0.0
  %515 = vmatpush1.msra.mxu0 %v395
  %516 = vmatprep.subr.mxu0 0.0
  %517 = vmatpush1.msra.mxu0 0.0
  %518 = vmatprep.subr.mxu0 0.0
  %519 = vmatpush1.msra.mxu0 0.0
  %520 = vmatprep.subr.mxu0 0.0
  %521 = vmatpush1.msra.mxu0 0.0
  %522 = vmatprep.subr.mxu0 0.0
  %523 = vmatpush1.msra.mxu0 0.0
  %524 = vmatprep.subr.mxu0 0.0
  %525 = vmatpush1.msra.mxu0 0.0
  %526 = vmatprep.subr.mxu0 0.0
  %527 = vmatpush1.msra.mxu0 0.0
  %528 = vmatprep.subr.mxu0 0.0
  %529 = vmatpush1.msra.mxu0 0.0
  %530 = vmatprep.subr.mxu0 0.0
  %531 = vmatpush1.msra.mxu0 0.0
  %532 = vmatprep.subr.mxu0 0.0
  %533 = vmatpush1.msra.mxu0 0.0
  %534 = vmatprep.subr.mxu0 0.0
  %535 = vmatpush1.msra.mxu0 0.0
  %536 = vmatprep.subr.mxu0 0.0
  %537 = vmatpush1.msra.mxu0 0.0
  %538 = vmatprep.subr.mxu0 0.0
  %539 = vmatpush1.msra.mxu0 0.0
  %540 = vmatprep.subr.mxu0 0.0
  %541 = vmatpush1.msra.mxu0 0.0
  %542 = vmatprep.subr.mxu0 0.0
  %543 = vmatpush1.msra.mxu0 0.0
  %544 = vmatprep.subr.mxu0 0.0
  %545 = vmatpush1.msra.mxu0 0.0
  %546 = vmatprep.subr.mxu0 0.0
  %547 = vmatpush1.msra.mxu0 0.0
  %548 = vmatprep.mubr.f32.mxu0 0.0
  %549 = vmatmul.mubr.f32.gmra.mrb[0].mxu0 %v47
  %v550 = vpop.f32.mrb[0].mxu0
  %v551 = vadd.f32 %v409, %v550
  %v552 = vpop.f32.mrb[0].mxu0
  %553 = vdwg.mxu0
  %v554 = vadd.f32 %v274, %v480
  %v555 = vxor.u32 %v554, 2147483648
  %v556 = vmul.f32 %v555, 1.442695
  %v557 = vpow.pop %v556
  %v558 = vadd.f32 %v557, 1.0
  %v559 = vrcp.pop %v558
  %v560 = vmul.f32 1.0, %v559
  %v561 = vadd.f32 %v276, %v482
  %v562 = vxor.u32 %v561, 2147483648
  %v563 = vmul.f32 %v562, 1.442695
  %v564 = vpow.pop %v563
  %v565 = vadd.f32 %v564, 1.0
  %v566 = vrcp.pop %v565
  %v567 = vmul.f32 1.0, %v566
  %v568 = vmul.f32 %v560, %v551
  %v569 = vadd.f32 %v345, %v568
  %v570 = vtanh.pop %v569
  %v571 = vsub.f32 1.0, %v567
  %v572 = vmul.f32 %v571, %v570
  %v573 = vmul.f32 %v567, %v47
  %v574 = vadd.f32 %v572, %v573
  %v575 = vld [vmem:[%s2] sm:$0xff]
  %v576 = vld [vmem:[%s9] sm:$0xff]
  %v577 = vld [vmem:[%s9 + $0x8] sm:$0xff]
  %v578 = vld [vmem:[%s9 + $0x10] sm:$0xff]
  %v579 = vld [vmem:[%s9 + $0x18] sm:$0xff]
  %v580 = vld [vmem:[%s9 + $0x20] sm:$0xff]
  %v581 = vld [vmem:[%s9 + $0x28] sm:$0xff]
  %v582 = vld [vmem:[%s10] sm:$0x3f]
  %v584 = vlaneseq
  %v585 = vshrl.u32 %v584, 7
  %v586 = vsub.s32 0, %v585
  %v587 = vrot.slane %v582, %v586
  %v588 = vlaneseq
  %v589 = vshrl.u32 %v588, 7
  %v590 = vsub.s32 1, %v589
  %v591 = vrot.slane %v582, %v590
  %v592 = vlaneseq
  %v593 = vshrl.u32 %v592, 7
  %v594 = vsub.s32 2, %v593
  %v595 = vrot.slane %v582, %v594
  %v596 = vlaneseq
  %v597 = vshrl.u32 %v596, 7
  %v598 = vsub.s32 3, %v597
  %v599 = vrot.slane %v582, %v598
  %v600 = vlaneseq
  %v601 = vshrl.u32 %v600, 7
  %v602 = vsub.s32 4, %v601
  %v603 = vrot.slane %v582, %v602
  %v604 = vlaneseq
  %v605 = vshrl.u32 %v604, 7
  %v606 = vsub.s32 5, %v605
  %v607 = vrot.slane %v582, %v606
  %vm614 = vcmask 64512
  %v616 = vsel %vm614, %v575, 0
  %618 = vmatprep.subr.mxu0 %v577
  %619 = vmatpush1.msra.mxu0 %v576
  %620 = vmatprep.subr.mxu0 0.0
  %621 = vmatpush1.msra.mxu0 0.0
  %622 = vmatprep.subr.mxu0 0.0
  %623 = vmatpush1.msra.mxu0 0.0
  %624 = vmatprep.subr.mxu0 0.0
  %625 = vmatpush1.msra.mxu0 0.0
  %626 = vmatprep.subr.mxu0 0.0
  %627 = vmatpush1.msra.mxu0 0.0
  %628 = vmatprep.subr.mxu0 0.0
  %629 = vmatpush1.msra.mxu0 0.0
  %630 = vmatprep.subr.mxu0 0.0
  %631 = vmatpush1.msra.mxu0 0.0
  %632 = vmatprep.subr.mxu0 0.0
  %633 = vmatpush1.msra.mxu0 0.0
  %634 = vmatprep.subr.mxu0 0.0
  %635 = vmatpush1.msra.mxu0 0.0
  %636 = vmatprep.subr.mxu0 0.0
  %637 = vmatpush1.msra.mxu0 0.0
  %638 = vmatprep.subr.mxu0 0.0
  %639 = vmatpush1.msra.mxu0 0.0
  %640 = vmatprep.subr.mxu0 0.0
  %641 = vmatpush1.msra.mxu0 0.0
  %642 = vmatprep.subr.mxu0 0.0
  %643 = vmatpush1.msra.mxu0 0.0
  %644 = vmatprep.subr.mxu0 0.0
  %645 = vmatpush1.msra.mxu0 0.0
  %646 = vmatprep.subr.mxu0 0.0
  %647 = vmatpush1.msra.mxu0 0.0
  %648 = vmatprep.subr.mxu0 0.0
  %649 = vmatpush1.msra.mxu0 0.0
  %650 = vmatprep.subr.mxu0 0.0
  %651 = vmatpush1.msra.mxu0 0.0
  %652 = vmatprep.subr.mxu0 0.0
  %653 = vmatpush1.msra.mxu0 0.0
  %654 = vmatprep.subr.mxu0 0.0
  %655 = vmatpush1.msra.mxu0 0.0
  %656 = vmatprep.subr.mxu0 0.0
  %657 = vmatpush1.msra.mxu0 0.0
  %658 = vmatprep.subr.mxu0 0.0
  %659 = vmatpush1.msra.mxu0 0.0
  %660 = vmatprep.subr.mxu0 0.0
  %661 = vmatpush1.msra.mxu0 0.0
  %662 = vmatprep.subr.mxu0 0.0
  %663 = vmatpush1.msra.mxu0 0.0
  %664 = vmatprep.subr.mxu0 0.0
  %665 = vmatpush1.msra.mxu0 0.0
  %666 = vmatprep.subr.mxu0 0.0
  %667 = vmatpush1.msra.mxu0 0.0
  %668 = vmatprep.subr.mxu0 0.0
  %669 = vmatpush1.msra.mxu0 0.0
  %670 = vmatprep.subr.mxu0 0.0
  %671 = vmatpush1.msra.mxu0 0.0
  %672 = vmatprep.subr.mxu0 0.0
  %673 = vmatpush1.msra.mxu0 0.0
  %674 = vmatprep.subr.mxu0 0.0
  %675 = vmatpush1.msra.mxu0 0.0
  %676 = vmatprep.subr.mxu0 0.0
  %677 = vmatpush1.msra.mxu0 0.0
  %678 = vmatprep.subr.mxu0 0.0
  %679 = vmatpush1.msra.mxu0 0.0
  %680 = vmatprep.subr.mxu0 0.0
  %681 = vmatpush1.msra.mxu0 0.0
  %682 = vmatprep.mubr.f32.mxu0 0.0
  %683 = vmatmul.mubr.f32.gmra.mrb[0].mxu0 %v616
  %v684 = vpop.f32.mrb[0].mxu0
  %v685 = vadd.f32 %v587, %v684
  %v686 = vpop.f32.mrb[0].mxu0
  %v687 = vadd.f32 %v591, %v686
  %688 = vdwg.mxu0
  %689 = vmatprep.subr.mxu0 %v579
  %690 = vmatpush1.msra.mxu0 %v578
  %691 = vmatprep.subr.mxu0 0.0
  %692 = vmatpush1.msra.mxu0 0.0
  %693 = vmatprep.subr.mxu0 0.0
  %694 = vmatpush1.msra.mxu0 0.0
  %695 = vmatprep.subr.mxu0 0.0
  %696 = vmatpush1.msra.mxu0 0.0
  %697 = vmatprep.subr.mxu0 0.0
  %698 = vmatpush1.msra.mxu0 0.0
  %699 = vmatprep.subr.mxu0 0.0
  %700 = vmatpush1.msra.mxu0 0.0
  %701 = vmatprep.subr.mxu0 0.0
  %702 = vmatpush1.msra.mxu0 0.0
  %703 = vmatprep.subr.mxu0 0.0
  %704 = vmatpush1.msra.mxu0 0.0
  %705 = vmatprep.subr.mxu0 0.0
  %706 = vmatpush1.msra.mxu0 0.0
  %707 = vmatprep.subr.mxu0 0.0
  %708 = vmatpush1.msra.mxu0 0.0
  %709 = vmatprep.subr.mxu0 0.0
  %710 = vmatpush1.msra.mxu0 0.0
  %711 = vmatprep.subr.mxu0 0.0
  %712 = vmatpush1.msra.mxu0 0.0
  %713 = vmatprep.subr.mxu0 0.0
  %714 = vmatpush1.msra.mxu0 0.0
  %715 = vmatprep.subr.mxu0 0.0
  %716 = vmatpush1.msra.mxu0 0.0
  %717 = vmatprep.subr.mxu0 0.0
  %718 = vmatpush1.msra.mxu0 0.0
  %719 = vmatprep.subr.mxu0 0.0
  %720 = vmatpush1.msra.mxu0 0.0
  %721 = vmatprep.subr.mxu0 0.0
  %722 = vmatpush1.msra.mxu0 0.0
  %723 = vmatprep.subr.mxu0 0.0
  %724 = vmatpush1.msra.mxu0 0.0
  %725 = vmatprep.subr.mxu0 0.0
  %726 = vmatpush1.msra.mxu0 0.0
  %727 = vmatprep.subr.mxu0 0.0
  %728 = vmatpush1.msra.mxu0 0.0
  %729 = vmatprep.subr.mxu0 0.0
  %730 = vmatpush1.msra.mxu0 0.0
  %731 = vmatprep.subr.mxu0 0.0
  %732 = vmatpush1.msra.mxu0 0.0
  %733 = vmatprep.subr.mxu0 0.0
  %734 = vmatpush1.msra.mxu0 0.0
  %735 = vmatprep.subr.mxu0 0.0
  %736 = vmatpush1.msra.mxu0 0.0
  %737 = vmatprep.subr.mxu0 0.0
  %738 = vmatpush1.msra.mxu0 0.0
  %739 = vmatprep.subr.mxu0 0.0
  %740 = vmatpush1.msra.mxu0 0.0
  %741 = vmatprep.subr.mxu0 0.0
  %742 = vmatpush1.msra.mxu0 0.0
  %743 = vmatprep.subr.mxu0 0.0
  %744 = vmatpush1.msra.mxu0 0.0
  %745 = vmatprep.subr.mxu0 0.0
  %746 = vmatpush1.msra.mxu0 0.0
  %747 = vmatprep.subr.mxu0 0.0
  %748 = vmatpush1.msra.mxu0 0.0
  %749 = vmatprep.subr.mxu0 0.0
  %750 = vmatpush1.msra.mxu0 0.0
  %751 = vmatprep.subr.mxu0 0.0
  %752 = vmatpush1.msra.mxu0 0.0
  %753 = vmatprep.mubr.f32.mxu0 0.0
  %754 = vmatmul.mubr.f32.gmra.mrb[0].mxu0 %v616
  %v755 = vpop.f32.mrb[0].mxu0
  %v756 = vadd.f32 %v595, %v755
  %v757 = vpop.f32.mrb[0].mxu0
  %v758 = vadd.f32 %v599, %v757
  %759 = vdwg.mxu0
  %760 = vmatprep.subr.mxu0 %v581
  %761 = vmatpush1.msra.mxu0 %v580
  %762 = vmatprep.subr.mxu0 0.0
  %763 = vmatpush1.msra.mxu0 0.0
  %764 = vmatprep.subr.mxu0 0.0
  %765 = vmatpush1.msra.mxu0 0.0
  %766 = vmatprep.subr.mxu0 0.0
  %767 = vmatpush1.msra.mxu0 0.0
  %768 = vmatprep.subr.mxu0 0.0
  %769 = vmatpush1.msra.mxu0 0.0
  %770 = vmatprep.subr.mxu0 0.0
  %771 = vmatpush1.msra.mxu0 0.0
  %772 = vmatprep.subr.mxu0 0.0
  %773 = vmatpush1.msra.mxu0 0.0
  %774 = vmatprep.subr.mxu0 0.0
  %775 = vmatpush1.msra.mxu0 0.0
  %776 = vmatprep.subr.mxu0 0.0
  %777 = vmatpush1.msra.mxu0 0.0
  %778 = vmatprep.subr.mxu0 0.0
  %779 = vmatpush1.msra.mxu0 0.0
  %780 = vmatprep.subr.mxu0 0.0
  %781 = vmatpush1.msra.mxu0 0.0
  %782 = vmatprep.subr.mxu0 0.0
  %783 = vmatpush1.msra.mxu0 0.0
  %784 = vmatprep.subr.mxu0 0.0
  %785 = vmatpush1.msra.mxu0 0.0
  %786 = vmatprep.subr.mxu0 0.0
  %787 = vmatpush1.msra.mxu0 0.0
  %788 = vmatprep.subr.mxu0 0.0
  %789 = vmatpush1.msra.mxu0 0.0
  %790 = vmatprep.subr.mxu0 0.0
  %791 = vmatpush1.msra.mxu0 0.0
  %792 = vmatprep.subr.mxu0 0.0
  %793 = vmatpush1.msra.mxu0 0.0
  %794 = vmatprep.subr.mxu0 0.0
  %795 = vmatpush1.msra.mxu0 0.0
  %796 = vmatprep.subr.mxu0 0.0
  %797 = vmatpush1.msra.mxu0 0.0
  %798 = vmatprep.subr.mxu0 0.0
  %799 = vmatpush1.msra.mxu0 0.0
  %800 = vmatprep.subr.mxu0 0.0
  %801 = vmatpush1.msra.mxu0 0.0
  %802 = vmatprep.subr.mxu0 0.0
  %803 = vmatpush1.msra.mxu0 0.0
  %804 = vmatprep.subr.mxu0 0.0
  %805 = vmatpush1.msra.mxu0 0.0
  %806 = vmatprep.subr.mxu0 0.0
  %807 = vmatpush1.msra.mxu0 0.0
  %808 = vmatprep.subr.mxu0 0.0
  %809 = vmatpush1.msra.mxu0 0.0
  %810 = vmatprep.subr.mxu0 0.0
  %811 = vmatpush1.msra.mxu0 0.0
  %812 = vmatprep.subr.mxu0 0.0
  %813 = vmatpush1.msra.mxu0 0.0
  %814 = vmatprep.subr.mxu0 0.0
  %815 = vmatpush1.msra.mxu0 0.0
  %816 = vmatprep.subr.mxu0 0.0
  %817 = vmatpush1.msra.mxu0 0.0
  %818 = vmatprep.subr.mxu0 0.0
  %819 = vmatpush1.msra.mxu0 0.0
  %820 = vmatprep.subr.mxu0 0.0
  %821 = vmatpush1.msra.mxu0 0.0
  %822 = vmatprep.subr.mxu0 0.0
  %823 = vmatpush1.msra.mxu0 0.0
  %824 = vmatprep.mubr.f32.mxu0 0.0
  %825 = vmatmul.mubr.f32.gmra.mrb[0].mxu0 %v616
  %v826 = vpop.f32.mrb[0].mxu0
  %v827 = vadd.f32 %v603, %v826
  %v828 = vpop.f32.mrb[0].mxu0
  %v829 = vadd.f32 %v607, %v828
  %830 = vdwg.mxu0
  %v831 = vld [vmem:[%s11] sm:$0xff]
  %v832 = vld [vmem:[%s11 + $0x8] sm:$0xff]
  %v833 = vld [vmem:[%s11 + $0x10] sm:$0xff]
  %v834 = vld [vmem:[%s11 + $0x18] sm:$0xff]
  %v835 = vld [vmem:[%s11 + $0x20] sm:$0xff]
  %v836 = vld [vmem:[%s11 + $0x28] sm:$0xff]
  %v837 = vld [vmem:[%s11 + $0x30] sm:$0xff]
  %v838 = vld [vmem:[%s11 + $0x38] sm:$0xff]
  %v839 = vld [vmem:[%s11 + $0x40] sm:$0xff]
  %v840 = vld [vmem:[%s11 + $0x48] sm:$0xff]
  %v841 = vld [vmem:[%s11 + $0x50] sm:$0xff]
  %v842 = vld [vmem:[%s11 + $0x58] sm:$0xff]
  %v843 = vld [vmem:[%s11 + $0x60] sm:$0xff]
  %v844 = vld [vmem:[%s11 + $0x68] sm:$0xff]
  %v845 = vld [vmem:[%s11 + $0x70] sm:$0xff]
  %v846 = vld [vmem:[%s11 + $0x78] sm:$0xff]
  %v847 = vld [vmem:[%s11 + $0x80] sm:$0xff]
  %v848 = vld [vmem:[%s11 + $0x88] sm:$0xff]
  %v849 = vld [vmem:[%s11 + $0x90] sm:$0xff]
  %v850 = vld [vmem:[%s11 + $0x98] sm:$0xff]
  %v851 = vld [vmem:[%s11 + $0xa0] sm:$0xff]
  %v852 = vld [vmem:[%s11 + $0xa8] sm:$0xff]
  %v853 = vld [vmem:[%s11 + $0xb0] sm:$0xff]
  %v854 = vld [vmem:[%s11 + $0xb8] sm:$0xff]
  %v855 = vld [vmem:[%s11 + $0xc0] sm:$0xff]
  %v856 = vld [vmem:[%s11 + $0xc8] sm:$0xff]
  %v857 = vld [vmem:[%s11 + $0xd0] sm:$0xff]
  %v858 = vld [vmem:[%s11 + $0xd8] sm:$0xff]
  %v859 = vld [vmem:[%s11 + $0xe0] sm:$0xff]
  %v860 = vld [vmem:[%s11 + $0xe8] sm:$0xff]
  %v861 = vld [vmem:[%s11 + $0xf0] sm:$0xff]
  %v862 = vld [vmem:[%s11 + $0xf8] sm:$0xff]
  %v863 = vld [vmem:[%s11 + $0x100] sm:$0xff]
  %v864 = vld [vmem:[%s11 + $0x108] sm:$0xff]
  %v865 = vld [vmem:[%s11 + $0x110] sm:$0xff]
  %v866 = vld [vmem:[%s11 + $0x118] sm:$0xff]
  %v867 = vld [vmem:[%s11 + $0x120] sm:$0xff]
  %v868 = vld [vmem:[%s11 + $0x128] sm:$0xff]
  %v869 = vld [vmem:[%s11 + $0x130] sm:$0xff]
  %v870 = vld [vmem:[%s11 + $0x138] sm:$0xff]
  %v871 = vld [vmem:[%s11 + $0x140] sm:$0xff]
  %v872 = vld [vmem:[%s11 + $0x148] sm:$0xff]
  %v873 = vld [vmem:[%s11 + $0x150] sm:$0xff]
  %v874 = vld [vmem:[%s11 + $0x158] sm:$0xff]
  %v875 = vld [vmem:[%s11 + $0x160] sm:$0xff]
  %v876 = vld [vmem:[%s11 + $0x168] sm:$0xff]
  %v877 = vld [vmem:[%s11 + $0x170] sm:$0xff]
  %v878 = vld [vmem:[%s11 + $0x178] sm:$0xff]
  %v879 = vld [vmem:[%s11 + $0x180] sm:$0xff]
  %v880 = vld [vmem:[%s11 + $0x188] sm:$0xff]
  %v881 = vld [vmem:[%s11 + $0x190] sm:$0xff]
  %v882 = vld [vmem:[%s11 + $0x198] sm:$0xff]
  %v883 = vld [vmem:[%s11 + $0x1a0] sm:$0xff]
  %v884 = vld [vmem:[%s11 + $0x1a8] sm:$0xff]
  %v885 = vld [vmem:[%s11 + $0x1b0] sm:$0xff]
  %v886 = vld [vmem:[%s11 + $0x1b8] sm:$0xff]
  %v887 = vld [vmem:[%s11 + $0x1c0] sm:$0xff]
  %v888 = vld [vmem:[%s11 + $0x1c8] sm:$0xff]
  %v889 = vld [vmem:[%s11 + $0x1d0] sm:$0xff]
  %v890 = vld [vmem:[%s11 + $0x1d8] sm:$0xff]
  %v891 = vld [vmem:[%s11 + $0x1e0] sm:$0xff]
  %v892 = vld [vmem:[%s11 + $0x1e8] sm:$0xff]
  %v893 = vld [vmem:[%s11 + $0x1f0] sm:$0xff]
  %v894 = vld [vmem:[%s11 + $0x1f8] sm:$0xff]
  %v895 = vld [vmem:[%s11 + $0x200] sm:$0xff]
  %v896 = vld [vmem:[%s11 + $0x208] sm:$0xff]
  %v897 = vld [vmem:[%s11 + $0x210] sm:$0xff]
  %v898 = vld [vmem:[%s11 + $0x218] sm:$0xff]
  %v899 = vld [vmem:[%s11 + $0x220] sm:$0xff]
  %v900 = vld [vmem:[%s11 + $0x228] sm:$0xff]
  %v901 = vld [vmem:[%s11 + $0x230] sm:$0xff]
  %v902 = vld [vmem:[%s11 + $0x238] sm:$0xff]
  %v903 = vld [vmem:[%s11 + $0x240] sm:$0xff]
  %v904 = vld [vmem:[%s11 + $0x248] sm:$0xff]
  %v905 = vld [vmem:[%s11 + $0x250] sm:$0xff]
  %v906 = vld [vmem:[%s11 + $0x258] sm:$0xff]
  %v907 = vld [vmem:[%s11 + $0x260] sm:$0xff]
  %v908 = vld [vmem:[%s11 + $0x268] sm:$0xff]
  %v909 = vld [vmem:[%s11 + $0x270] sm:$0xff]
  %v910 = vld [vmem:[%s11 + $0x278] sm:$0xff]
  %v911 = vld [vmem:[%s11 + $0x280] sm:$0xff]
  %v912 = vld [vmem:[%s11 + $0x288] sm:$0xff]
  %v913 = vld [vmem:[%s11 + $0x290] sm:$0xff]
  %v914 = vld [vmem:[%s11 + $0x298] sm:$0xff]
  %v915 = vld [vmem:[%s11 + $0x2a0] sm:$0xff]
  %v916 = vld [vmem:[%s11 + $0x2a8] sm:$0xff]
  %v917 = vld [vmem:[%s11 + $0x2b0] sm:$0xff]
  %v918 = vld [vmem:[%s11 + $0x2b8] sm:$0xff]
  %v919 = vld [vmem:[%s11 + $0x2c0] sm:$0xff]
  %v920 = vld [vmem:[%s11 + $0x2c8] sm:$0xff]
  %v921 = vld [vmem:[%s11 + $0x2d0] sm:$0xff]
  %v922 = vld [vmem:[%s11 + $0x2d8] sm:$0xff]
  %v923 = vld [vmem:[%s11 + $0x2e0] sm:$0xff]
  %v924 = vld [vmem:[%s11 + $0x2e8] sm:$0xff]
  %v925 = vld [vmem:[%s11 + $0x2f0] sm:$0xff]
  %v926 = vld [vmem:[%s11 + $0x2f8] sm:$0xff]
  %927 = vmatprep.subr.mxu0 %v832
  %928 = vmatpush1.msra.mxu0 %v831
  %929 = vmatprep.subr.mxu0 %v838
  %930 = vmatpush1.msra.mxu0 %v837
  %931 = vmatprep.subr.mxu0 %v844
  %932 = vmatpush1.msra.mxu0 %v843
  %933 = vmatprep.subr.mxu0 %v850
  %934 = vmatpush1.msra.mxu0 %v849
  %935 = vmatprep.subr.mxu0 %v856
  %936 = vmatpush1.msra.mxu0 %v855
  %937 = vmatprep.subr.mxu0 %v862
  %938 = vmatpush1.msra.mxu0 %v861
  %939 = vmatprep.subr.mxu0 %v868
  %940 = vmatpush1.msra.mxu0 %v867
  %941 = vmatprep.subr.mxu0 %v874
  %942 = vmatpush1.msra.mxu0 %v873
  %943 = vmatprep.subr.mxu0 %v880
  %944 = vmatpush1.msra.mxu0 %v879
  %945 = vmatprep.subr.mxu0 %v886
  %946 = vmatpush1.msra.mxu0 %v885
  %947 = vmatprep.subr.mxu0 %v892
  %948 = vmatpush1.msra.mxu0 %v891
  %949 = vmatprep.subr.mxu0 %v898
  %950 = vmatpush1.msra.mxu0 %v897
  %951 = vmatprep.subr.mxu0 %v904
  %952 = vmatpush1.msra.mxu0 %v903
  %953 = vmatprep.subr.mxu0 %v910
  %954 = vmatpush1.msra.mxu0 %v909
  %955 = vmatprep.subr.mxu0 %v916
  %956 = vmatpush1.msra.mxu0 %v915
  %957 = vmatprep.subr.mxu0 %v922
  %958 = vmatpush1.msra.mxu0 %v921
  %959 = vmatprep.subr.mxu0 0.0
  %960 = vmatpush1.msra.mxu0 0.0
  %961 = vmatprep.subr.mxu0 0.0
  %962 = vmatpush1.msra.mxu0 0.0
  %963 = vmatprep.subr.mxu0 0.0
  %964 = vmatpush1.msra.mxu0 0.0
  %965 = vmatprep.subr.mxu0 0.0
  %966 = vmatpush1.msra.mxu0 0.0
  %967 = vmatprep.subr.mxu0 0.0
  %968 = vmatpush1.msra.mxu0 0.0
  %969 = vmatprep.subr.mxu0 0.0
  %970 = vmatpush1.msra.mxu0 0.0
  %971 = vmatprep.subr.mxu0 0.0
  %972 = vmatpush1.msra.mxu0 0.0
  %973 = vmatprep.subr.mxu0 0.0
  %974 = vmatpush1.msra.mxu0 0.0
  %975 = vmatprep.subr.mxu0 0.0
  %976 = vmatpush1.msra.mxu0 0.0
  %977 = vmatprep.subr.mxu0 0.0
  %978 = vmatpush1.msra.mxu0 0.0
  %979 = vmatprep.subr.mxu0 0.0
  %980 = vmatpush1.msra.mxu0 0.0
  %981 = vmatprep.subr.mxu0 0.0
  %982 = vmatpush1.msra.mxu0 0.0
  %983 = vmatprep.subr.mxu0 0.0
  %984 = vmatpush1.msra.mxu0 0.0
  %985 = vmatprep.subr.mxu0 0.0
  %986 = vmatpush1.msra.mxu0 0.0
  %987 = vmatprep.subr.mxu0 0.0
  %988 = vmatpush1.msra.mxu0 0.0
  %989 = vmatprep.subr.mxu0 0.0
  %990 = vmatpush1.msra.mxu0 0.0
  %991 = vmatprep.mubr.f32.mxu0 0.0
  %992 = vmatmul.mubr.f32.gmra.mrb[0].mxu0 %v574
  %v993 = vpop.f32.mrb[0].mxu0
  %v994 = vadd.f32 0.0, %v993
  %v995 = vpop.f32.mrb[0].mxu0
  %v996 = vadd.f32 0.0, %v995
  %997 = vdwg.mxu0
  %998 = vmatprep.subr.mxu0 %v834
  %999 = vmatpush1.msra.mxu0 %v833
  %1000 = vmatprep.subr.mxu0 %v840
  %1001 = vmatpush1.msra.mxu0 %v839
  %1002 = vmatprep.subr.mxu0 %v846
  %1003 = vmatpush1.msra.mxu0 %v845
  %1004 = vmatprep.subr.mxu0 %v852
  %1005 = vmatpush1.msra.mxu0 %v851
  %1006 = vmatprep.subr.mxu0 %v858
  %1007 = vmatpush1.msra.mxu0 %v857
  %1008 = vmatprep.subr.mxu0 %v864
  %1009 = vmatpush1.msra.mxu0 %v863
  %1010 = vmatprep.subr.mxu0 %v870
  %1011 = vmatpush1.msra.mxu0 %v869
  %1012 = vmatprep.subr.mxu0 %v876
  %1013 = vmatpush1.msra.mxu0 %v875
  %1014 = vmatprep.subr.mxu0 %v882
  %1015 = vmatpush1.msra.mxu0 %v881
  %1016 = vmatprep.subr.mxu0 %v888
  %1017 = vmatpush1.msra.mxu0 %v887
  %1018 = vmatprep.subr.mxu0 %v894
  %1019 = vmatpush1.msra.mxu0 %v893
  %1020 = vmatprep.subr.mxu0 %v900
  %1021 = vmatpush1.msra.mxu0 %v899
  %1022 = vmatprep.subr.mxu0 %v906
  %1023 = vmatpush1.msra.mxu0 %v905
  %1024 = vmatprep.subr.mxu0 %v912
  %1025 = vmatpush1.msra.mxu0 %v911
  %1026 = vmatprep.subr.mxu0 %v918
  %1027 = vmatpush1.msra.mxu0 %v917
  %1028 = vmatprep.subr.mxu0 %v924
  %1029 = vmatpush1.msra.mxu0 %v923
  %1030 = vmatprep.subr.mxu0 0.0
  %1031 = vmatpush1.msra.mxu0 0.0
  %1032 = vmatprep.subr.mxu0 0.0
  %1033 = vmatpush1.msra.mxu0 0.0
  %1034 = vmatprep.subr.mxu0 0.0
  %1035 = vmatpush1.msra.mxu0 0.0
  %1036 = vmatprep.subr.mxu0 0.0
  %1037 = vmatpush1.msra.mxu0 0.0
  %1038 = vmatprep.subr.mxu0 0.0
  %1039 = vmatpush1.msra.mxu0 0.0
  %1040 = vmatprep.subr.mxu0 0.0
  %1041 = vmatpush1.msra.mxu0 0.0
  %1042 = vmatprep.subr.mxu0 0.0
  %1043 = vmatpush1.msra.mxu0 0.0
  %1044 = vmatprep.subr.mxu0 0.0
  %1045 = vmatpush1.msra.mxu0 0.0
  %1046 = vmatprep.subr.mxu0 0.0
  %1047 = vmatpush1.msra.mxu0 0.0
  %1048 = vmatprep.subr.mxu0 0.0
  %1049 = vmatpush1.msra.mxu0 0.0
  %1050 = vmatprep.subr.mxu0 0.0
  %1051 = vmatpush1.msra.mxu0 0.0
  %1052 = vmatprep.subr.mxu0 0.0
  %1053 = vmatpush1.msra.mxu0 0.0
  %1054 = vmatprep.subr.mxu0 0.0
  %1055 = vmatpush1.msra.mxu0 0.0
  %1056 = vmatprep.subr.mxu0 0.0
  %1057 = vmatpush1.msra.mxu0 0.0
  %1058 = vmatprep.subr.mxu0 0.0
  %1059 = vmatpush1.msra.mxu0 0.0
  %1060 = vmatprep.subr.mxu0 0.0
  %1061 = vmatpush1.msra.mxu0 0.0
  %1062 = vmatprep.mubr.f32.mxu0 0.0
  %1063 = vmatmul.mubr.f32.gmra.mrb[0].mxu0 %v574
  %v1064 = vpop.f32.mrb[0].mxu0
  %v1065 = vadd.f32 0.0, %v1064
  %v1066 = vpop.f32.mrb[0].mxu0
  %v1067 = vadd.f32 0.0, %v1066
  %1068 = vdwg.mxu0
  %1069 = vmatprep.subr.mxu0 %v836
  %1070 = vmatpush1.msra.mxu0 %v835
  %1071 = vmatprep.subr.mxu0 %v842
  %1072 = vmatpush1.msra.mxu0 %v841
  %1073 = vmatprep.subr.mxu0 %v848
  %1074 = vmatpush1.msra.mxu0 %v847
  %1075 = vmatprep.subr.mxu0 %v854
  %1076 = vmatpush1.msra.mxu0 %v853
  %1077 = vmatprep.subr.mxu0 %v860
  %1078 = vmatpush1.msra.mxu0 %v859
  %1079 = vmatprep.subr.mxu0 %v866
  %1080 = vmatpush1.msra.mxu0 %v865
  %1081 = vmatprep.subr.mxu0 %v872
  %1082 = vmatpush1.msra.mxu0 %v871
  %1083 = vmatprep.subr.mxu0 %v878
  %1084 = vmatpush1.msra.mxu0 %v877
  %1085 = vmatprep.subr.mxu0 %v884
  %1086 = vmatpush1.msra.mxu0 %v883
  %1087 = vmatprep.subr.mxu0 %v890
  %1088 = vmatpush1.msra.mxu0 %v889
  %1089 = vmatprep.subr.mxu0 %v896
  %1090 = vmatpush1.msra.mxu0 %v895
  %1091 = vmatprep.subr.mxu0 %v902
  %1092 = vmatpush1.msra.mxu0 %v901
  %1093 = vmatprep.subr.mxu0 %v908
  %1094 = vmatpush1.msra.mxu0 %v907
  %1095 = vmatprep.subr.mxu0 %v914
  %1096 = vmatpush1.msra.mxu0 %v913
  %1097 = vmatprep.subr.mxu0 %v920
  %1098 = vmatpush1.msra.mxu0 %v919
  %1099 = vmatprep.subr.mxu0 %v926
  %1100 = vmatpush1.msra.mxu0 %v925
  %1101 = vmatprep.subr.mxu0 0.0
  %1102 = vmatpush1.msra.mxu0 0.0
  %1103 = vmatprep.subr.mxu0 0.0
  %1104 = vmatpush1.msra.mxu0 0.0
  %1105 = vmatprep.subr.mxu0 0.0
  %1106 = vmatpush1.msra.mxu0 0.0
  %1107 = vmatprep.subr.mxu0 0.0
  %1108 = vmatpush1.msra.mxu0 0.0
  %1109 = vmatprep.subr.mxu0 0.0
  %1110 = vmatpush1.msra.mxu0 0.0
  %1111 = vmatprep.subr.mxu0 0.0
  %1112 = vmatpush1.msra.mxu0 0.0
  %1113 = vmatprep.subr.mxu0 0.0
  %1114 = vmatpush1.msra.mxu0 0.0
  %1115 = vmatprep.subr.mxu0 0.0
  %1116 = vmatpush1.msra.mxu0 0.0
  %1117 = vmatprep.subr.mxu0 0.0
  %1118 = vmatpush1.msra.mxu0 0.0
  %1119 = vmatprep.subr.mxu0 0.0
  %1120 = vmatpush1.msra.mxu0 0.0
  %1121 = vmatprep.subr.mxu0 0.0
  %1122 = vmatpush1.msra.mxu0 0.0
  %1123 = vmatprep.subr.mxu0 0.0
  %1124 = vmatpush1.msra.mxu0 0.0
  %1125 = vmatprep.subr.mxu0 0.0
  %1126 = vmatpush1.msra.mxu0 0.0
  %1127 = vmatprep.subr.mxu0 0.0
  %1128 = vmatpush1.msra.mxu0 0.0
  %1129 = vmatprep.subr.mxu0 0.0
  %1130 = vmatpush1.msra.mxu0 0.0
  %1131 = vmatprep.subr.mxu0 0.0
  %1132 = vmatpush1.msra.mxu0 0.0
  %1133 = vmatprep.mubr.f32.mxu0 0.0
  %1134 = vmatmul.mubr.f32.gmra.mrb[0].mxu0 %v574
  %v1135 = vpop.f32.mrb[0].mxu0
  %v1136 = vadd.f32 0.0, %v1135
  %v1137 = vpop.f32.mrb[0].mxu0
  %v1138 = vadd.f32 0.0, %v1137
  %1139 = vdwg.mxu0
  %v1140 = vmul.f32 %v685, %v994
  %v1141 = vmul.f32 %v687, %v996
  %v1142 = vmul.f32 %v756, %v1065
  %v1143 = vmul.f32 %v758, %v1067
  %v1144 = vmul.f32 %v827, %v1136
  %v1145 = vmul.f32 %v829, %v1138
  %v1146 = vld [vmem:[%s12] sm:$0xff]
  %v1147 = vld [vmem:[%s12 + $0x8] sm:$0xff]
  %v1148 = vld [vmem:[%s12 + $0x10] sm:$0xff]
  %v1149 = vld [vmem:[%s12 + $0x18] sm:$0xff]
  %v1150 = vld [vmem:[%s12 + $0x20] sm:$0xff]
  %v1151 = vld [vmem:[%s12 + $0x28] sm:$0xff]
  %v1152 = vld [vmem:[%s12 + $0x30] sm:$0xff]
  %v1153 = vld [vmem:[%s12 + $0x38] sm:$0xff]
  %v1154 = vld [vmem:[%s12 + $0x40] sm:$0xff]
  %v1155 = vld [vmem:[%s12 + $0x48] sm:$0xff]
  %v1156 = vld [vmem:[%s12 + $0x50] sm:$0xff]
  %v1157 = vld [vmem:[%s12 + $0x58] sm:$0xff]
  %v1158 = vld [vmem:[%s12 + $0x60] sm:$0xff]
  %v1159 = vld [vmem:[%s12 + $0x68] sm:$0xff]
  %v1160 = vld [vmem:[%s12 + $0x70] sm:$0xff]
  %v1161 = vld [vmem:[%s12 + $0x78] sm:$0xff]
  %v1162 = vld [vmem:[%s12 + $0x80] sm:$0xff]
  %v1163 = vld [vmem:[%s12 + $0x88] sm:$0xff]
  %v1164 = vld [vmem:[%s12 + $0x90] sm:$0xff]
  %v1165 = vld [vmem:[%s12 + $0x98] sm:$0xff]
  %v1166 = vld [vmem:[%s12 + $0xa0] sm:$0xff]
  %v1167 = vld [vmem:[%s12 + $0xa8] sm:$0xff]
  %v1168 = vld [vmem:[%s12 + $0xb0] sm:$0xff]
  %v1169 = vld [vmem:[%s12 + $0xb8] sm:$0xff]
  %v1170 = vld [vmem:[%s12 + $0xc0] sm:$0xff]
  %v1171 = vld [vmem:[%s12 + $0xc8] sm:$0xff]
  %v1172 = vld [vmem:[%s12 + $0xd0] sm:$0xff]
  %v1173 = vld [vmem:[%s12 + $0xd8] sm:$0xff]
  %v1174 = vld [vmem:[%s12 + $0xe0] sm:$0xff]
  %v1175 = vld [vmem:[%s12 + $0xe8] sm:$0xff]
  %v1176 = vld [vmem:[%s12 + $0xf0] sm:$0xff]
  %v1177 = vld [vmem:[%s12 + $0xf8] sm:$0xff]
  %v1178 = vld [vmem:[%s12 + $0x100] sm:$0xff]
  %v1179 = vld [vmem:[%s12 + $0x108] sm:$0xff]
  %v1180 = vld [vmem:[%s12 + $0x110] sm:$0xff]
  %v1181 = vld [vmem:[%s12 + $0x118] sm:$0xff]
  %v1182 = vld [vmem:[%s12 + $0x120] sm:$0xff]
  %v1183 = vld [vmem:[%s12 + $0x128] sm:$0xff]
  %v1184 = vld [vmem:[%s12 + $0x130] sm:$0xff]
  %v1185 = vld [vmem:[%s12 + $0x138] sm:$0xff]
  %v1186 = vld [vmem:[%s12 + $0x140] sm:$0xff]
  %v1187 = vld [vmem:[%s12 + $0x148] sm:$0xff]
  %v1188 = vld [vmem:[%s12 + $0x150] sm:$0xff]
  %v1189 = vld [vmem:[%s12 + $0x158] sm:$0xff]
  %v1190 = vld [vmem:[%s12 + $0x160] sm:$0xff]
  %v1191 = vld [vmem:[%s12 + $0x168] sm:$0xff]
  %v1192 = vld [vmem:[%s12 + $0x170] sm:$0xff]
  %v1193 = vld [vmem:[%s12 + $0x178] sm:$0xff]
  %v1194 = vld [vmem:[%s12 + $0x180] sm:$0xff]
  %v1195 = vld [vmem:[%s12 + $0x188] sm:$0xff]
  %v1196 = vld [vmem:[%s12 + $0x190] sm:$0xff]
  %v1197 = vld [vmem:[%s12 + $0x198] sm:$0xff]
  %v1198 = vld [vmem:[%s12 + $0x1a0] sm:$0xff]
  %v1199 = vld [vmem:[%s12 + $0x1a8] sm:$0xff]
  %v1200 = vld [vmem:[%s12 + $0x1b0] sm:$0xff]
  %v1201 = vld [vmem:[%s12 + $0x1b8] sm:$0xff]
  %v1202 = vld [vmem:[%s12 + $0x1c0] sm:$0xff]
  %v1203 = vld [vmem:[%s12 + $0x1c8] sm:$0xff]
  %v1204 = vld [vmem:[%s12 + $0x1d0] sm:$0xff]
  %v1205 = vld [vmem:[%s12 + $0x1d8] sm:$0xff]
  %v1206 = vld [vmem:[%s12 + $0x1e0] sm:$0xff]
  %v1207 = vld [vmem:[%s12 + $0x1e8] sm:$0xff]
  %v1208 = vld [vmem:[%s12 + $0x1f0] sm:$0xff]
  %v1209 = vld [vmem:[%s12 + $0x1f8] sm:$0xff]
  %v1210 = vld [vmem:[%s12 + $0x200] sm:$0xff]
  %v1211 = vld [vmem:[%s12 + $0x208] sm:$0xff]
  %v1212 = vld [vmem:[%s12 + $0x210] sm:$0xff]
  %v1213 = vld [vmem:[%s12 + $0x218] sm:$0xff]
  %v1214 = vld [vmem:[%s12 + $0x220] sm:$0xff]
  %v1215 = vld [vmem:[%s12 + $0x228] sm:$0xff]
  %v1216 = vld [vmem:[%s12 + $0x230] sm:$0xff]
  %v1217 = vld [vmem:[%s12 + $0x238] sm:$0xff]
  %v1218 = vld [vmem:[%s12 + $0x240] sm:$0xff]
  %v1219 = vld [vmem:[%s12 + $0x248] sm:$0xff]
  %v1220 = vld [vmem:[%s12 + $0x250] sm:$0xff]
  %v1221 = vld [vmem:[%s12 + $0x258] sm:$0xff]
  %v1222 = vld [vmem:[%s12 + $0x260] sm:$0xff]
  %v1223 = vld [vmem:[%s12 + $0x268] sm:$0xff]
  %v1224 = vld [vmem:[%s12 + $0x270] sm:$0xff]
  %v1225 = vld [vmem:[%s12 + $0x278] sm:$0xff]
  %v1226 = vld [vmem:[%s12 + $0x280] sm:$0xff]
  %v1227 = vld [vmem:[%s12 + $0x288] sm:$0xff]
  %v1228 = vld [vmem:[%s12 + $0x290] sm:$0xff]
  %v1229 = vld [vmem:[%s12 + $0x298] sm:$0xff]
  %v1230 = vld [vmem:[%s12 + $0x2a0] sm:$0xff]
  %v1231 = vld [vmem:[%s12 + $0x2a8] sm:$0xff]
  %v1232 = vld [vmem:[%s12 + $0x2b0] sm:$0xff]
  %v1233 = vld [vmem:[%s12 + $0x2b8] sm:$0xff]
  %v1234 = vld [vmem:[%s12 + $0x2c0] sm:$0xff]
  %v1235 = vld [vmem:[%s12 + $0x2c8] sm:$0xff]
  %v1236 = vld [vmem:[%s12 + $0x2d0] sm:$0xff]
  %v1237 = vld [vmem:[%s12 + $0x2d8] sm:$0xff]
  %v1238 = vld [vmem:[%s12 + $0x2e0] sm:$0xff]
  %v1239 = vld [vmem:[%s12 + $0x2e8] sm:$0xff]
  %v1240 = vld [vmem:[%s12 + $0x2f0] sm:$0xff]
  %v1241 = vld [vmem:[%s12 + $0x2f8] sm:$0xff]
  %1242 = vmatprep.subr.mxu0 0.0
  %1243 = vmatpush1.msra.mxu0 %v1146
  %1244 = vmatprep.subr.mxu0 0.0
  %1245 = vmatpush1.msra.mxu0 %v1147
  %1246 = vmatprep.subr.mxu0 0.0
  %1247 = vmatpush1.msra.mxu0 %v1148
  %1248 = vmatprep.subr.mxu0 0.0
  %1249 = vmatpush1.msra.mxu0 %v1149
  %1250 = vmatprep.subr.mxu0 0.0
  %1251 = vmatpush1.msra.mxu0 %v1150
  %1252 = vmatprep.subr.mxu0 0.0
  %1253 = vmatpush1.msra.mxu0 %v1151
  %1254 = vmatprep.subr.mxu0 0.0
  %1255 = vmatpush1.msra.mxu0 %v1152
  %1256 = vmatprep.subr.mxu0 0.0
  %1257 = vmatpush1.msra.mxu0 %v1153
  %1258 = vmatprep.subr.mxu0 0.0
  %1259 = vmatpush1.msra.mxu0 %v1154
  %1260 = vmatprep.subr.mxu0 0.0
  %1261 = vmatpush1.msra.mxu0 %v1155
  %1262 = vmatprep.subr.mxu0 0.0
  %1263 = vmatpush1.msra.mxu0 %v1156
  %1264 = vmatprep.subr.mxu0 0.0
  %1265 = vmatpush1.msra.mxu0 %v1157
  %1266 = vmatprep.subr.mxu0 0.0
  %1267 = vmatpush1.msra.mxu0 %v1158
  %1268 = vmatprep.subr.mxu0 0.0
  %1269 = vmatpush1.msra.mxu0 %v1159
  %1270 = vmatprep.subr.mxu0 0.0
  %1271 = vmatpush1.msra.mxu0 %v1160
  %1272 = vmatprep.subr.mxu0 0.0
  %1273 = vmatpush1.msra.mxu0 %v1161
  %1274 = vmatprep.subr.mxu0 0.0
  %1275 = vmatpush1.msra.mxu0 %v1162
  %1276 = vmatprep.subr.mxu0 0.0
  %1277 = vmatpush1.msra.mxu0 %v1163
  %1278 = vmatprep.subr.mxu0 0.0
  %1279 = vmatpush1.msra.mxu0 %v1164
  %1280 = vmatprep.subr.mxu0 0.0
  %1281 = vmatpush1.msra.mxu0 %v1165
  %1282 = vmatprep.subr.mxu0 0.0
  %1283 = vmatpush1.msra.mxu0 %v1166
  %1284 = vmatprep.subr.mxu0 0.0
  %1285 = vmatpush1.msra.mxu0 %v1167
  %1286 = vmatprep.subr.mxu0 0.0
  %1287 = vmatpush1.msra.mxu0 %v1168
  %1288 = vmatprep.subr.mxu0 0.0
  %1289 = vmatpush1.msra.mxu0 %v1169
  %1290 = vmatprep.subr.mxu0 0.0
  %1291 = vmatpush1.msra.mxu0 %v1170
  %1292 = vmatprep.subr.mxu0 0.0
  %1293 = vmatpush1.msra.mxu0 %v1171
  %1294 = vmatprep.subr.mxu0 0.0
  %1295 = vmatpush1.msra.mxu0 %v1172
  %1296 = vmatprep.subr.mxu0 0.0
  %1297 = vmatpush1.msra.mxu0 %v1173
  %1298 = vmatprep.subr.mxu0 0.0
  %1299 = vmatpush1.msra.mxu0 %v1174
  %1300 = vmatprep.subr.mxu0 0.0
  %1301 = vmatpush1.msra.mxu0 %v1175
  %1302 = vmatprep.subr.mxu0 0.0
  %1303 = vmatpush1.msra.mxu0 %v1176
  %1304 = vmatprep.subr.mxu0 0.0
  %1305 = vmatpush1.msra.mxu0 %v1177
  %1306 = vmatprep.mubr.f32.mxu0 %v1141
  %1307 = vmatmul.mubr.f32.gmra.mrb[0].mxu0 %v1140
  %v1308 = vpop.f32.mrb[0].mxu0
  %v1309 = vadd.f32 0.0, %v1308
  %v1310 = vpop.f32.mrb[0].mxu0
  %1311 = vdwg.mxu0
  %1312 = vmatprep.subr.mxu0 0.0
  %1313 = vmatpush1.msra.mxu0 %v1178
  %1314 = vmatprep.subr.mxu0 0.0
  %1315 = vmatpush1.msra.mxu0 %v1179
  %1316 = vmatprep.subr.mxu0 0.0
  %1317 = vmatpush1.msra.mxu0 %v1180
  %1318 = vmatprep.subr.mxu0 0.0
  %1319 = vmatpush1.msra.mxu0 %v1181
  %1320 = vmatprep.subr.mxu0 0.0
  %1321 = vmatpush1.msra.mxu0 %v1182
  %1322 = vmatprep.subr.mxu0 0.0
  %1323 = vmatpush1.msra.mxu0 %v1183
  %1324 = vmatprep.subr.mxu0 0.0
  %1325 = vmatpush1.msra.mxu0 %v1184
  %1326 = vmatprep.subr.mxu0 0.0
  %1327 = vmatpush1.msra.mxu0 %v1185
  %1328 = vmatprep.subr.mxu0 0.0
  %1329 = vmatpush1.msra.mxu0 %v1186
  %1330 = vmatprep.subr.mxu0 0.0
  %1331 = vmatpush1.msra.mxu0 %v1187
  %1332 = vmatprep.subr.mxu0 0.0
  %1333 = vmatpush1.msra.mxu0 %v1188
  %1334 = vmatprep.subr.mxu0 0.0
  %1335 = vmatpush1.msra.mxu0 %v1189
  %1336 = vmatprep.subr.mxu0 0.0
  %1337 = vmatpush1.msra.mxu0 %v1190
  %1338 = vmatprep.subr.mxu0 0.0
  %1339 = vmatpush1.msra.mxu0 %v1191
  %1340 = vmatprep.subr.mxu0 0.0
  %1341 = vmatpush1.msra.mxu0 %v1192
  %1342 = vmatprep.subr.mxu0 0.0
  %1343 = vmatpush1.msra.mxu0 %v1193
  %1344 = vmatprep.subr.mxu0 0.0
  %1345 = vmatpush1.msra.mxu0 %v1194
  %1346 = vmatprep.subr.mxu0 0.0
  %1347 = vmatpush1.msra.mxu0 %v1195
  %1348 = vmatprep.subr.mxu0 0.0
  %1349 = vmatpush1.msra.mxu0 %v1196
  %1350 = vmatprep.subr.mxu0 0.0
  %1351 = vmatpush1.msra.mxu0 %v1197
  %1352 = vmatprep.subr.mxu0 0.0
  %1353 = vmatpush1.msra.mxu0 %v1198
  %1354 = vmatprep.subr.mxu0 0.0
  %1355 = vmatpush1.msra.mxu0 %v1199
  %1356 = vmatprep.subr.mxu0 0.0
  %1357 = vmatpush1.msra.mxu0 %v1200
  %1358 = vmatprep.subr.mxu0 0.0
  %1359 = vmatpush1.msra.mxu0 %v1201
  %1360 = vmatprep.subr.mxu0 0.0
  %1361 = vmatpush1.msra.mxu0 %v1202
  %1362 = vmatprep.subr.mxu0 0.0
  %1363 = vmatpush1.msra.mxu0 %v1203
  %1364 = vmatprep.subr.mxu0 0.0
  %1365 = vmatpush1.msra.mxu0 %v1204
  %1366 = vmatprep.subr.mxu0 0.0
  %1367 = vmatpush1.msra.mxu0 %v1205
  %1368 = vmatprep.subr.mxu0 0.0
  %1369 = vmatpush1.msra.mxu0 %v1206
  %1370 = vmatprep.subr.mxu0 0.0
  %1371 = vmatpush1.msra.mxu0 %v1207
  %1372 = vmatprep.subr.mxu0 0.0
  %1373 = vmatpush1.msra.mxu0 %v1208
  %1374 = vmatprep.subr.mxu0 0.0
  %1375 = vmatpush1.msra.mxu0 %v1209
  %1376 = vmatprep.mubr.f32.mxu0 %v1143
  %1377 = vmatmul.mubr.f32.gmra.mrb[0].mxu0 %v1142
  %v1378 = vpop.f32.mrb[0].mxu0
  %v1379 = vadd.f32 %v1309, %v1378
  %v1380 = vpop.f32.mrb[0].mxu0
  %1381 = vdwg.mxu0
  %1382 = vmatprep.subr.mxu0 0.0
  %1383 = vmatpush1.msra.mxu0 %v1210
  %1384 = vmatprep.subr.mxu0 0.0
  %1385 = vmatpush1.msra.mxu0 %v1211
  %1386 = vmatprep.subr.mxu0 0.0
  %1387 = vmatpush1.msra.mxu0 %v1212
  %1388 = vmatprep.subr.mxu0 0.0
  %1389 = vmatpush1.msra.mxu0 %v1213
  %1390 = vmatprep.subr.mxu0 0.0
  %1391 = vmatpush1.msra.mxu0 %v1214
  %1392 = vmatprep.subr.mxu0 0.0
  %1393 = vmatpush1.msra.mxu0 %v1215
  %1394 = vmatprep.subr.mxu0 0.0
  %1395 = vmatpush1.msra.mxu0 %v1216
  %1396 = vmatprep.subr.mxu0 0.0
  %1397 = vmatpush1.msra.mxu0 %v1217
  %1398 = vmatprep.subr.mxu0 0.0
  %1399 = vmatpush1.msra.mxu0 %v1218
  %1400 = vmatprep.subr.mxu0 0.0
  %1401 = vmatpush1.msra.mxu0 %v1219
  %1402 = vmatprep.subr.mxu0 0.0
  %1403 = vmatpush1.msra.mxu0 %v1220
  %1404 = vmatprep.subr.mxu0 0.0
  %1405 = vmatpush1.msra.mxu0 %v1221
  %1406 = vmatprep.subr.mxu0 0.0
  %1407 = vmatpush1.msra.mxu0 %v1222
  %1408 = vmatprep.subr.mxu0 0.0
  %1409 = vmatpush1.msra.mxu0 %v1223
  %1410 = vmatprep.subr.mxu0 0.0
  %1411 = vmatpush1.msra.mxu0 %v1224
  %1412 = vmatprep.subr.mxu0 0.0
  %1413 = vmatpush1.msra.mxu0 %v1225
  %1414 = vmatprep.subr.mxu0 0.0
  %1415 = vmatpush1.msra.mxu0 %v1226
  %1416 = vmatprep.subr.mxu0 0.0
  %1417 = vmatpush1.msra.mxu0 %v1227
  %1418 = vmatprep.subr.mxu0 0.0
  %1419 = vmatpush1.msra.mxu0 %v1228
  %1420 = vmatprep.subr.mxu0 0.0
  %1421 = vmatpush1.msra.mxu0 %v1229
  %1422 = vmatprep.subr.mxu0 0.0
  %1423 = vmatpush1.msra.mxu0 %v1230
  %1424 = vmatprep.subr.mxu0 0.0
  %1425 = vmatpush1.msra.mxu0 %v1231
  %1426 = vmatprep.subr.mxu0 0.0
  %1427 = vmatpush1.msra.mxu0 %v1232
  %1428 = vmatprep.subr.mxu0 0.0
  %1429 = vmatpush1.msra.mxu0 %v1233
  %1430 = vmatprep.subr.mxu0 0.0
  %1431 = vmatpush1.msra.mxu0 %v1234
  %1432 = vmatprep.subr.mxu0 0.0
  %1433 = vmatpush1.msra.mxu0 %v1235
  %1434 = vmatprep.subr.mxu0 0.0
  %1435 = vmatpush1.msra.mxu0 %v1236
  %1436 = vmatprep.subr.mxu0 0.0
  %1437 = vmatpush1.msra.mxu0 %v1237
  %1438 = vmatprep.subr.mxu0 0.0
  %1439 = vmatpush1.msra.mxu0 %v1238
  %1440 = vmatprep.subr.mxu0 0.0
  %1441 = vmatpush1.msra.mxu0 %v1239
  %1442 = vmatprep.subr.mxu0 0.0
  %1443 = vmatpush1.msra.mxu0 %v1240
  %1444 = vmatprep.subr.mxu0 0.0
  %1445 = vmatpush1.msra.mxu0 %v1241
  %1446 = vmatprep.mubr.f32.mxu0 %v1145
  %1447 = vmatmul.mubr.f32.gmra.mrb[0].mxu0 %v1144
  %v1448 = vpop.f32.mrb[0].mxu0
  %v1449 = vadd.f32 %v1379, %v1448
  %v1450 = vpop.f32.mrb[0].mxu0
  %1451 = vdwg.mxu0
  %1452 = vst [vmem:[%s13] sm:$0xff] %v1449
  %1453 = vst [vmem:[%s14] sm:$0xff] %v574
  // Predicated region
  $region54: #{rnn_agent_forward.1} parent=0 // pred_check
    _
  $region55: #{rnn_agent_forward.1} parent=0 // pred_check_branch
    %1455 = sbr.rel (0) target = $region57
  $region56: #{rnn_agent_forward.1} parent=0 // pred_region
    _
  $region57: #{rnn_agent_forward.1} parent=0 // pred_fallthru
    _
  // Predicated region
  $region58: #{rnn_agent_forward.1} parent=0 // pred_check
    _
  $region59: #{rnn_agent_forward.1} parent=0 // pred_check_branch
    %1457 = sbr.rel (0) target = $region61
  $region60: #{rnn_agent_forward.1} parent=0 // pred_region
    _
  $region61: #{rnn_agent_forward.1} parent=0 // pred_fallthru
    _
  // Predicated region
  $region62: #{rnn_agent_forward.1} parent=0 // pred_check
    _
  $region63: #{rnn_agent_forward.1} parent=0 // pred_check_branch
    %1459 = sbr.rel (0) target = $region65
  $region64: #{rnn_agent_forward.1} parent=0 // pred_region
    _
  $region65: #{rnn_agent_forward.1} parent=0 // pred_fallthru
    _
  // Predicated region
  $region66: #{rnn_agent_forward.1} parent=0 // pred_check
    _
  $region67: #{rnn_agent_forward.1} parent=0 // pred_check_branch
    %1461 = sbr.rel (0) target = $region69
  $region68: #{rnn_agent_forward.1} parent=0 // pred_region
    _
  $region69: #{rnn_agent_forward.1} parent=0 // pred_fallthru
    _

</llo_original>
